<compile_context>
chip_gen: v7x
topology: tpu7x:2x2x1
jax: 0.10.0
libtpu: 0.0.40
codegen_flags: <defaults>
</compile_context>

<pallas_src>
import functools

import jax
import jax.numpy as jnp
from jax.experimental import pallas as pl
from jax.experimental.pallas import tpu as pltpu


def _fused_kernel(eps, x_ref, w_ref, gamma_ref, beta_ref, res_ref, o_ref):
    # x_ref:      [Cin, M]  full input slab (grid-invariant)
    # w_ref:      [TN, Cin] scale-folded 1x1-conv weight tile
    # gamma/beta: [TN, 1]   BN affine params for this output-channel tile
    # res_ref:    [TN, M]   residual tile (x361)
    # o_ref:      [TN, M]   output tile
    y = jnp.dot(w_ref[...].astype(jnp.float32), x_ref[...].astype(jnp.float32),
                preferred_element_type=jnp.float32)              # [TN, M] (MXU)

    inv_m = 1.0 / y.shape[1]
    mean = jnp.sum(y, axis=1, keepdims=True) * inv_m             # [TN, 1]
    ex2 = jnp.sum(y * y, axis=1, keepdims=True) * inv_m          # [TN, 1]
    var = jnp.maximum(ex2 - mean * mean, 0.0)                    # biased var

    # Fold BN normalize + affine into a per-channel scale/bias (cheap [TN,1] work).
    a = jax.lax.rsqrt(var + eps) * gamma_ref[...].astype(jnp.float32)
    b = beta_ref[...].astype(jnp.float32) - mean * a

    # Single fused epilogue pass over the [TN, M] tile: residual + a*y + b, relu.
    o_ref[...] = jnp.maximum(res_ref[...].astype(jnp.float32) + y * a + b,
                             0.0).astype(o_ref.dtype)


def fused_mul_conv_bn_add_relu(x372, x367, x361, weight, gamma, beta,
                               eps=1e-5, tn=None):
    """x372:[1,C,1,1]  x367:[1,C,H,W]  x361:[1,C,H,W]  weight:[C,C,1,1]."""
    N, C, H, W = x367.shape
    assert N == 1, "kernel assumes batch 1 (as in the reference module)"
    M = H * W

    # Output-channel tile size. 256 matches the v6e/v7x MXU width; at the demo
    # shape C == 256 so the grid collapses to a single invocation.
    if tn is None:
        tn = C if C <= 256 else 256
    assert C % tn == 0 and tn % 8 == 0, "tn must divide C and be a multiple of 8"

    # IMPORTANT: the pixel axis M is the lane axis of every block and is NEVER
    # tiled — training-mode BN needs full-batch statistics, so every grid step
    # must see all M pixels of its output-channel tile.
    # TODO(synk): for large H*W where the [C, M] slabs no longer fit VMEM
    # (notably v7x's 64 MiB), switch to a two-pass kernel (pass 1: matmul +
    # per-channel sum/sumsq accumulation; pass 2: normalize + residual + relu).

    x = x367.reshape(C, M).astype(jnp.float32)                   # [Cin, M]
    res = x361.reshape(C, M).astype(jnp.float32)                 # [Cout, M]
    # Fold the per-channel scale x372 into the weight: (s*x) conv W == x conv (W*s).
    w2 = weight.reshape(C, C).astype(jnp.float32) * x372.reshape(1, C)  # [Cout, Cin]
    g = gamma.reshape(C, 1).astype(jnp.float32)
    b = beta.reshape(C, 1).astype(jnp.float32)

    grid = (C // tn,)
    out = pl.pallas_call(
        functools.partial(_fused_kernel, eps),
        out_shape=jax.ShapeDtypeStruct((C, M), x367.dtype),
        grid_spec=pltpu.PrefetchScalarGridSpec(
            num_scalar_prefetch=0,
            grid=grid,
            in_specs=[
                pl.BlockSpec((C, M), lambda j: (0, 0)),    # x: full slab, grid-invariant
                pl.BlockSpec((tn, C), lambda j: (j, 0)),   # scale-folded weight tile
                pl.BlockSpec((tn, 1), lambda j: (j, 0)),   # gamma
                pl.BlockSpec((tn, 1), lambda j: (j, 0)),   # beta
                pl.BlockSpec((tn, M), lambda j: (j, 0)),   # residual tile
            ],
            out_specs=pl.BlockSpec((tn, M), lambda j: (j, 0)),
        ),
        compiler_params=pltpu.CompilerParams(
            dimension_semantics=("parallel",)),              # TC-shardable on v7x when grid > 1
    )(x, w2, g, b, res)

    return out.reshape(N, C, H, W)                           # pure reshape, no transpose


def _reference(x372, x367, x361, weight, gamma, beta, eps=1e-5):
    x373 = x372 * x367                                        # [1,C,H,W]
    N, C, H, W = x373.shape
    y = (weight.reshape(C, C) @ x373.reshape(C, H * W)).reshape(N, C, H, W)
    mean = jnp.mean(y, axis=(0, 2, 3), keepdims=True)
    var = jnp.mean((y - mean) ** 2, axis=(0, 2, 3), keepdims=True)
    yhat = (y - mean) * jax.lax.rsqrt(var + eps)
    yhat = yhat * gamma.reshape(1, C, 1, 1) + beta.reshape(1, C, 1, 1)
    return jnp.maximum(x361 + yhat, 0.0)


if __name__ == "__main__":
    # Small shapes consistent with the module: N=1, C=256, H=W=14 (module uses
    # C=2904, H=W=14 — scaled down in channels only).
    N, C, H, W = 1, 256, 14, 14
    key = jax.random.PRNGKey(0)
    k1, k2, k3, k4, k5, k6 = jax.random.split(key, 6)

    x372 = jax.random.normal(k1, (N, C, 1, 1), jnp.float32)   # per-channel scale
    x367 = jax.random.normal(k2, (N, C, H, W), jnp.float32)
    x361 = jax.random.normal(k3, (N, C, H, W), jnp.float32)

    # Deterministic synthetic parameters (no checkpoint).
    weight = jax.random.normal(k4, (C, C, 1, 1), jnp.float32) * 0.02
    gamma = 1.0 + 0.1 * jax.random.normal(k5, (C,), jnp.float32)
    beta = 0.1 * jax.random.normal(k6, (C,), jnp.float32)

    out = fused_mul_conv_bn_add_relu(x372, x367, x361, weight, gamma, beta)
    out = jax.block_until_ready(out)

    ref = _reference(x372, x367, x361, weight, gamma, beta)
    assert out.shape == (N, C, H, W)
    assert jnp.allclose(out, ref, atol=1e-4, rtol=1e-4), "mismatch vs reference"

    print("KERNEL_OK")
</pallas_src>

<mosaic_0001>
module attributes {stable_mosaic.version = 11 : i64} {
  func.func @_fused_kernel(%arg0: i32, %arg1: memref<256x196xf32, #tpu.memory_space<vmem>>, %arg2: memref<256x256xf32, #tpu.memory_space<vmem>>, %arg3: memref<256x1xf32, #tpu.memory_space<vmem>>, %arg4: memref<256x1xf32, #tpu.memory_space<vmem>>, %arg5: memref<256x196xf32, #tpu.memory_space<vmem>>, %arg6: memref<256x196xf32, #tpu.memory_space<vmem>>) attributes {dimension_semantics = [#tpu.dimension_semantics<parallel>], iteration_bounds = array<i64: 1>, scalar_prefetch = 0 : i64, scratch_operands = 0 : i64, tpu.core_type = #tpu.core_type<tc>, window_params = [{pipeline_mode = #tpu.pipeline_mode<synchronous>, transform_indices = @transform_0, window_bounds = array<i64: 256, 196>}, {transform_indices = @transform_1, window_bounds = array<i64: 256, 256>}, {transform_indices = @transform_2, window_bounds = array<i64: 256, 1>}, {transform_indices = @transform_3, window_bounds = array<i64: 256, 1>}, {transform_indices = @transform_4, window_bounds = array<i64: 256, 196>}, {transform_indices = @transform_5, window_bounds = array<i64: 256, 196>}]} {
    %c0 = arith.constant 0 : index
    %c0_0 = arith.constant 0 : index
    %0 = vector.load %arg2[%c0, %c0_0] : memref<256x256xf32, #tpu.memory_space<vmem>>, vector<256x256xf32>
    %c0_1 = arith.constant 0 : index
    %c0_2 = arith.constant 0 : index
    %1 = vector.load %arg1[%c0_1, %c0_2] : memref<256x196xf32, #tpu.memory_space<vmem>>, vector<256x196xf32>
    %cst = arith.constant dense<0.000000e+00> : vector<256x196xf32>
    %2 = tpu.matmul %0, %1, %cst {dimension_numbers = #tpu.dot_dimension_numbers<[1], [0], [0], [1], [0, 0, 1, 1], [], []>} : vector<256x256xf32>, vector<256x196xf32>, vector<256x196xf32> -> vector<256x196xf32>
    %cst_3 = arith.constant dense<0.000000e+00> : vector<256xf32>
    %3 = vector.multi_reduction <add>, %2, %cst_3 [1] : vector<256x196xf32> to vector<256xf32>
    %4 = vector.shape_cast %3 : vector<256xf32> to vector<256x1xf32>
    %cst_4 = arith.constant 0.00510204071 : f32
    %5 = vector.broadcast %cst_4 : f32 to vector<256x1xf32>
    %6 = arith.mulf %4, %5 : vector<256x1xf32>
    %7 = arith.mulf %2, %2 : vector<256x196xf32>
    %cst_5 = arith.constant dense<0.000000e+00> : vector<256xf32>
    %8 = vector.multi_reduction <add>, %7, %cst_5 [1] : vector<256x196xf32> to vector<256xf32>
    %9 = vector.shape_cast %8 : vector<256xf32> to vector<256x1xf32>
    %cst_6 = arith.constant 0.00510204071 : f32
    %10 = vector.broadcast %cst_6 : f32 to vector<256x1xf32>
    %11 = arith.mulf %9, %10 : vector<256x1xf32>
    %12 = arith.mulf %6, %6 : vector<256x1xf32>
    %13 = arith.subf %11, %12 : vector<256x1xf32>
    %cst_7 = arith.constant 0.000000e+00 : f32
    %14 = vector.broadcast %cst_7 : f32 to vector<256x1xf32>
    %15 = arith.maximumf %13, %14 : vector<256x1xf32>
    %cst_8 = arith.constant 9.99999974E-6 : f32
    %16 = vector.broadcast %cst_8 : f32 to vector<256x1xf32>
    %17 = arith.addf %15, %16 : vector<256x1xf32>
    %18 = math.rsqrt %17 : vector<256x1xf32>
    %c0_9 = arith.constant 0 : index
    %c0_10 = arith.constant 0 : index
    %19 = vector.load %arg3[%c0_9, %c0_10] : memref<256x1xf32, #tpu.memory_space<vmem>>, vector<256x1xf32>
    %20 = arith.mulf %18, %19 : vector<256x1xf32>
    %c0_11 = arith.constant 0 : index
    %c0_12 = arith.constant 0 : index
    %21 = vector.load %arg4[%c0_11, %c0_12] : memref<256x1xf32, #tpu.memory_space<vmem>>, vector<256x1xf32>
    %22 = arith.mulf %6, %20 : vector<256x1xf32>
    %23 = arith.subf %21, %22 : vector<256x1xf32>
    %c0_13 = arith.constant 0 : index
    %c0_14 = arith.constant 0 : index
    %24 = vector.load %arg5[%c0_13, %c0_14] : memref<256x196xf32, #tpu.memory_space<vmem>>, vector<256x196xf32>
    %25 = vector.broadcast %20 : vector<256x1xf32> to vector<256x196xf32>
    %26 = arith.mulf %2, %25 : vector<256x196xf32>
    %27 = arith.addf %24, %26 : vector<256x196xf32>
    %28 = vector.broadcast %23 : vector<256x1xf32> to vector<256x196xf32>
    %29 = arith.addf %27, %28 : vector<256x196xf32>
    %cst_15 = arith.constant 0.000000e+00 : f32
    %30 = vector.broadcast %cst_15 : f32 to vector<256x196xf32>
    %31 = arith.maximumf %29, %30 : vector<256x196xf32>
    %c0_16 = arith.constant 0 : index
    %c0_17 = arith.constant 0 : index
    %32 = vector.load %arg6[%c0_16, %c0_17] : memref<256x196xf32, #tpu.memory_space<vmem>>, vector<256x196xf32>
    tpu.vector_store %arg6[%c0_16, %c0_17], %31 {strides = array<i32>} : memref<256x196xf32, #tpu.memory_space<vmem>>, vector<256x196xf32>,
    return
  }
  func.func @transform_0(%arg0: i32) -> (i32, i32) {
    %c0_i32 = arith.constant 0 : i32
    %c0_i32_0 = arith.constant 0 : i32
    %c0_i32_1 = arith.constant 0 : i32
    return %c0_i32, %c0_i32_0 : i32, i32
  }
  func.func @transform_1(%arg0: i32) -> (i32, i32) {
    %c0_i32 = arith.constant 0 : i32
    %c0_i32_0 = arith.constant 0 : i32
    return %arg0, %c0_i32 : i32, i32
  }
  func.func @transform_2(%arg0: i32) -> (i32, i32) {
    %c0_i32 = arith.constant 0 : i32
    %c0_i32_0 = arith.constant 0 : i32
    return %arg0, %c0_i32 : i32, i32
  }
  func.func @transform_3(%arg0: i32) -> (i32, i32) {
    %c0_i32 = arith.constant 0 : i32
    %c0_i32_0 = arith.constant 0 : i32
    return %arg0, %c0_i32 : i32, i32
  }
  func.func @transform_4(%arg0: i32) -> (i32, i32) {
    %c0_i32 = arith.constant 0 : i32
    %c0_i32_0 = arith.constant 0 : i32
    return %arg0, %c0_i32 : i32, i32
  }
  func.func @transform_5(%arg0: i32) -> (i32, i32) {
    %c0_i32 = arith.constant 0 : i32
    %c0_i32_0 = arith.constant 0 : i32
    return %arg0, %c0_i32 : i32, i32
  }
}

</mosaic_0001>

<llo_original>
// kernel: tpu_custom_call.1
$region0: #{tpu_custom_call.1}
  #allocation0 [shape = 'u32[]', space=smem, size = 0x4, offset = 0x4, fixed_abs, tag = 'smem constant byte address 0x4 - core index']
  #allocation1 [shape = 'u32[144,128]{1,0:T(1,128)}', space=vmem, size = 0x12000, scoped, tag = 'internal scratch']
  %s0 = inlined_call_operand.vmem [shape: f32[256,196], index: 0, kind: input, shape index: {}]
  %s1 = inlined_call_operand.vmem [shape: f32[256,256], index: 1, kind: input, shape index: {}]
  %s2 = inlined_call_operand.vmem [shape: f32[256,1], index: 2, kind: input, shape index: {}]
  %s3 = inlined_call_operand.vmem [shape: f32[256,1], index: 3, kind: input, shape index: {}]
  %s4 = inlined_call_operand.vmem [shape: f32[256,196], index: 4, kind: input, shape index: {}]
  %s5 = inlined_call_operand.vmem [shape: f32[256,196], index: 5, kind: output, shape index: {}]
  %s6 = sld [smem:[#allocation0]]
  $region30: #{tpu_custom_call.1} parent=0
    _
  %s8 = ssub.s32 1, %s6
  %s9 = scalar_select 0, %s8, %s6
  // Predicated region
  $region2: #{tpu_custom_call.1} parent=0 // pred_check
    _
  $region3: #{tpu_custom_call.1} parent=0 // pred_check_branch
    %11 = sbr.rel (0) target = $region5
  $region4: #{tpu_custom_call.1} parent=0 // pred_region
    _
  $region5: #{tpu_custom_call.1} parent=0 // pred_fallthru
    _
  // Predicated region
  $region6: #{tpu_custom_call.1} parent=0 // pred_check
    _
  $region7: #{tpu_custom_call.1} parent=0 // pred_check_branch
    %13 = sbr.rel (0) target = $region9
  $region8: #{tpu_custom_call.1} parent=0 // pred_region
    _
  $region9: #{tpu_custom_call.1} parent=0 // pred_fallthru
    _
  // Predicated region
  $region10: #{tpu_custom_call.1} parent=0 // pred_check
    _
  $region11: #{tpu_custom_call.1} parent=0 // pred_check_branch
    %15 = sbr.rel (0) target = $region13
  $region12: #{tpu_custom_call.1} parent=0 // pred_region
    _
  $region13: #{tpu_custom_call.1} parent=0 // pred_fallthru
    _
  // Predicated region
  $region14: #{tpu_custom_call.1} parent=0 // pred_check
    _
  $region15: #{tpu_custom_call.1} parent=0 // pred_check_branch
    %17 = sbr.rel (0) target = $region17
  $region16: #{tpu_custom_call.1} parent=0 // pred_region
    _
  $region17: #{tpu_custom_call.1} parent=0 // pred_fallthru
    _
  // Predicated region
  $region18: #{tpu_custom_call.1} parent=0 // pred_check
    _
  $region19: #{tpu_custom_call.1} parent=0 // pred_check_branch
    %19 = sbr.rel (0) target = $region21
  $region20: #{tpu_custom_call.1} parent=0 // pred_region
    _
  $region21: #{tpu_custom_call.1} parent=0 // pred_fallthru
    _
  %v20 = vld [vmem:[%s1] sm:$0xff]
  %v21 = vld [vmem:[%s1 + $0x8] sm:$0xff]
  %v22 = vld [vmem:[%s1 + $0x10] sm:$0xff]
  %v23 = vld [vmem:[%s1 + $0x18] sm:$0xff]
  %v24 = vld [vmem:[%s1 + $0x20] sm:$0xff]
  %v25 = vld [vmem:[%s1 + $0x28] sm:$0xff]
  %v26 = vld [vmem:[%s1 + $0x30] sm:$0xff]
  %v27 = vld [vmem:[%s1 + $0x38] sm:$0xff]
  %v28 = vld [vmem:[%s1 + $0x40] sm:$0xff]
  %v29 = vld [vmem:[%s1 + $0x48] sm:$0xff]
  %v30 = vld [vmem:[%s1 + $0x50] sm:$0xff]
  %v31 = vld [vmem:[%s1 + $0x58] sm:$0xff]
  %v32 = vld [vmem:[%s1 + $0x60] sm:$0xff]
  %v33 = vld [vmem:[%s1 + $0x68] sm:$0xff]
  %v34 = vld [vmem:[%s1 + $0x70] sm:$0xff]
  %v35 = vld [vmem:[%s1 + $0x78] sm:$0xff]
  %v36 = vld [vmem:[%s1 + $0x80] sm:$0xff]
  %v37 = vld [vmem:[%s1 + $0x88] sm:$0xff]
  %v38 = vld [vmem:[%s1 + $0x90] sm:$0xff]
  %v39 = vld [vmem:[%s1 + $0x98] sm:$0xff]
  %v40 = vld [vmem:[%s1 + $0xa0] sm:$0xff]
  %v41 = vld [vmem:[%s1 + $0xa8] sm:$0xff]
  %v42 = vld [vmem:[%s1 + $0xb0] sm:$0xff]
  %v43 = vld [vmem:[%s1 + $0xb8] sm:$0xff]
  %v44 = vld [vmem:[%s1 + $0xc0] sm:$0xff]
  %v45 = vld [vmem:[%s1 + $0xc8] sm:$0xff]
  %v46 = vld [vmem:[%s1 + $0xd0] sm:$0xff]
  %v47 = vld [vmem:[%s1 + $0xd8] sm:$0xff]
  %v48 = vld [vmem:[%s1 + $0xe0] sm:$0xff]
  %v49 = vld [vmem:[%s1 + $0xe8] sm:$0xff]
  %v50 = vld [vmem:[%s1 + $0xf0] sm:$0xff]
  %v51 = vld [vmem:[%s1 + $0xf8] sm:$0xff]
  %v52 = vld [vmem:[%s1 + $0x100] sm:$0xff]
  %v53 = vld [vmem:[%s1 + $0x108] sm:$0xff]
  %v54 = vld [vmem:[%s1 + $0x110] sm:$0xff]
  %v55 = vld [vmem:[%s1 + $0x118] sm:$0xff]
  %v56 = vld [vmem:[%s1 + $0x120] sm:$0xff]
  %v57 = vld [vmem:[%s1 + $0x128] sm:$0xff]
  %v58 = vld [vmem:[%s1 + $0x130] sm:$0xff]
  %v59 = vld [vmem:[%s1 + $0x138] sm:$0xff]
  %v60 = vld [vmem:[%s1 + $0x140] sm:$0xff]
  %v61 = vld [vmem:[%s1 + $0x148] sm:$0xff]
  %v62 = vld [vmem:[%s1 + $0x150] sm:$0xff]
  %v63 = vld [vmem:[%s1 + $0x158] sm:$0xff]
  %v64 = vld [vmem:[%s1 + $0x160] sm:$0xff]
  %v65 = vld [vmem:[%s1 + $0x168] sm:$0xff]
  %v66 = vld [vmem:[%s1 + $0x170] sm:$0xff]
  %v67 = vld [vmem:[%s1 + $0x178] sm:$0xff]
  %v68 = vld [vmem:[%s1 + $0x180] sm:$0xff]
  %v69 = vld [vmem:[%s1 + $0x188] sm:$0xff]
  %v70 = vld [vmem:[%s1 + $0x190] sm:$0xff]
  %v71 = vld [vmem:[%s1 + $0x198] sm:$0xff]
  %v72 = vld [vmem:[%s1 + $0x1a0] sm:$0xff]
  %v73 = vld [vmem:[%s1 + $0x1a8] sm:$0xff]
  %v74 = vld [vmem:[%s1 + $0x1b0] sm:$0xff]
  %v75 = vld [vmem:[%s1 + $0x1b8] sm:$0xff]
  %v76 = vld [vmem:[%s1 + $0x1c0] sm:$0xff]
  %v77 = vld [vmem:[%s1 + $0x1c8] sm:$0xff]
  %v78 = vld [vmem:[%s1 + $0x1d0] sm:$0xff]
  %v79 = vld [vmem:[%s1 + $0x1d8] sm:$0xff]
  %v80 = vld [vmem:[%s1 + $0x1e0] sm:$0xff]
  %v81 = vld [vmem:[%s1 + $0x1e8] sm:$0xff]
  %v82 = vld [vmem:[%s1 + $0x1f0] sm:$0xff]
  %v83 = vld [vmem:[%s1 + $0x1f8] sm:$0xff]
  %v84 = vld [vmem:[%s0] sm:$0xff]
  %v85 = vld [vmem:[%s0 + $0x8] sm:$0xff]
  %v86 = vld [vmem:[%s0 + $0x10] sm:$0xff]
  %v87 = vld [vmem:[%s0 + $0x18] sm:$0xff]
  %v88 = vld [vmem:[%s0 + $0x20] sm:$0xff]
  %v89 = vld [vmem:[%s0 + $0x28] sm:$0xff]
  %v90 = vld [vmem:[%s0 + $0x30] sm:$0xff]
  %v91 = vld [vmem:[%s0 + $0x38] sm:$0xff]
  %v92 = vld [vmem:[%s0 + $0x40] sm:$0xff]
  %v93 = vld [vmem:[%s0 + $0x48] sm:$0xff]
  %v94 = vld [vmem:[%s0 + $0x50] sm:$0xff]
  %v95 = vld [vmem:[%s0 + $0x58] sm:$0xff]
  %v96 = vld [vmem:[%s0 + $0x60] sm:$0xff]
  %v97 = vld [vmem:[%s0 + $0x68] sm:$0xff]
  %v98 = vld [vmem:[%s0 + $0x70] sm:$0xff]
  %v99 = vld [vmem:[%s0 + $0x78] sm:$0xff]
  %v100 = vld [vmem:[%s0 + $0x80] sm:$0xff]
  %v101 = vld [vmem:[%s0 + $0x88] sm:$0xff]
  %v102 = vld [vmem:[%s0 + $0x90] sm:$0xff]
  %v103 = vld [vmem:[%s0 + $0x98] sm:$0xff]
  %v104 = vld [vmem:[%s0 + $0xa0] sm:$0xff]
  %v105 = vld [vmem:[%s0 + $0xa8] sm:$0xff]
  %v106 = vld [vmem:[%s0 + $0xb0] sm:$0xff]
  %v107 = vld [vmem:[%s0 + $0xb8] sm:$0xff]
  %v108 = vld [vmem:[%s0 + $0xc0] sm:$0xff]
  %v109 = vld [vmem:[%s0 + $0xc8] sm:$0xff]
  %v110 = vld [vmem:[%s0 + $0xd0] sm:$0xff]
  %v111 = vld [vmem:[%s0 + $0xd8] sm:$0xff]
  %v112 = vld [vmem:[%s0 + $0xe0] sm:$0xff]
  %v113 = vld [vmem:[%s0 + $0xe8] sm:$0xff]
  %v114 = vld [vmem:[%s0 + $0xf0] sm:$0xff]
  %v115 = vld [vmem:[%s0 + $0xf8] sm:$0xff]
  %v116 = vld [vmem:[%s0 + $0x100] sm:$0xff]
  %v117 = vld [vmem:[%s0 + $0x108] sm:$0xff]
  %v118 = vld [vmem:[%s0 + $0x110] sm:$0xff]
  %v119 = vld [vmem:[%s0 + $0x118] sm:$0xff]
  %v120 = vld [vmem:[%s0 + $0x120] sm:$0xff]
  %v121 = vld [vmem:[%s0 + $0x128] sm:$0xff]
  %v122 = vld [vmem:[%s0 + $0x130] sm:$0xff]
  %v123 = vld [vmem:[%s0 + $0x138] sm:$0xff]
  %v124 = vld [vmem:[%s0 + $0x140] sm:$0xff]
  %v125 = vld [vmem:[%s0 + $0x148] sm:$0xff]
  %v126 = vld [vmem:[%s0 + $0x150] sm:$0xff]
  %v127 = vld [vmem:[%s0 + $0x158] sm:$0xff]
  %v128 = vld [vmem:[%s0 + $0x160] sm:$0xff]
  %v129 = vld [vmem:[%s0 + $0x168] sm:$0xff]
  %v130 = vld [vmem:[%s0 + $0x170] sm:$0xff]
  %v131 = vld [vmem:[%s0 + $0x178] sm:$0xff]
  %v132 = vld [vmem:[%s0 + $0x180] sm:$0xff]
  %v133 = vld [vmem:[%s0 + $0x188] sm:$0xff]
  %v134 = vld [vmem:[%s0 + $0x190] sm:$0xff]
  %v135 = vld [vmem:[%s0 + $0x198] sm:$0xff]
  %v136 = vld [vmem:[%s0 + $0x1a0] sm:$0xff]
  %v137 = vld [vmem:[%s0 + $0x1a8] sm:$0xff]
  %v138 = vld [vmem:[%s0 + $0x1b0] sm:$0xff]
  %v139 = vld [vmem:[%s0 + $0x1b8] sm:$0xff]
  %v140 = vld [vmem:[%s0 + $0x1c0] sm:$0xff]
  %v141 = vld [vmem:[%s0 + $0x1c8] sm:$0xff]
  %v142 = vld [vmem:[%s0 + $0x1d0] sm:$0xff]
  %v143 = vld [vmem:[%s0 + $0x1d8] sm:$0xff]
  %v144 = vld [vmem:[%s0 + $0x1e0] sm:$0xff]
  %v145 = vld [vmem:[%s0 + $0x1e8] sm:$0xff]
  %v146 = vld [vmem:[%s0 + $0x1f0] sm:$0xff]
  %v147 = vld [vmem:[%s0 + $0x1f8] sm:$0xff]
  %148 = vmatprep.subr.mxu0 %v85
  %149 = vmatpush1.msra.mxu0 %v84
  %150 = vmatprep.subr.mxu0 %v87
  %151 = vmatpush1.msra.mxu0 %v86
  %152 = vmatprep.subr.mxu0 %v89
  %153 = vmatpush1.msra.mxu0 %v88
  %154 = vmatprep.subr.mxu0 %v91
  %155 = vmatpush1.msra.mxu0 %v90
  %156 = vmatprep.subr.mxu0 %v93
  %157 = vmatpush1.msra.mxu0 %v92
  %158 = vmatprep.subr.mxu0 %v95
  %159 = vmatpush1.msra.mxu0 %v94
  %160 = vmatprep.subr.mxu0 %v97
  %161 = vmatpush1.msra.mxu0 %v96
  %162 = vmatprep.subr.mxu0 %v99
  %163 = vmatpush1.msra.mxu0 %v98
  %164 = vmatprep.subr.mxu0 %v101
  %165 = vmatpush1.msra.mxu0 %v100
  %166 = vmatprep.subr.mxu0 %v103
  %167 = vmatpush1.msra.mxu0 %v102
  %168 = vmatprep.subr.mxu0 %v105
  %169 = vmatpush1.msra.mxu0 %v104
  %170 = vmatprep.subr.mxu0 %v107
  %171 = vmatpush1.msra.mxu0 %v106
  %172 = vmatprep.subr.mxu0 %v109
  %173 = vmatpush1.msra.mxu0 %v108
  %174 = vmatprep.subr.mxu0 %v111
  %175 = vmatpush1.msra.mxu0 %v110
  %176 = vmatprep.subr.mxu0 %v113
  %177 = vmatpush1.msra.mxu0 %v112
  %178 = vmatprep.subr.mxu0 %v115
  %179 = vmatpush1.msra.mxu0 %v114
  %180 = vmatprep.subr.mxu0 %v117
  %181 = vmatpush1.msra.mxu0 %v116
  %182 = vmatprep.subr.mxu0 %v119
  %183 = vmatpush1.msra.mxu0 %v118
  %184 = vmatprep.subr.mxu0 %v121
  %185 = vmatpush1.msra.mxu0 %v120
  %186 = vmatprep.subr.mxu0 %v123
  %187 = vmatpush1.msra.mxu0 %v122
  %188 = vmatprep.subr.mxu0 %v125
  %189 = vmatpush1.msra.mxu0 %v124
  %190 = vmatprep.subr.mxu0 %v127
  %191 = vmatpush1.msra.mxu0 %v126
  %192 = vmatprep.subr.mxu0 %v129
  %193 = vmatpush1.msra.mxu0 %v128
  %194 = vmatprep.subr.mxu0 %v131
  %195 = vmatpush1.msra.mxu0 %v130
  %196 = vmatprep.subr.mxu0 %v133
  %197 = vmatpush1.msra.mxu0 %v132
  %198 = vmatprep.subr.mxu0 %v135
  %199 = vmatpush1.msra.mxu0 %v134
  %200 = vmatprep.subr.mxu0 %v137
  %201 = vmatpush1.msra.mxu0 %v136
  %202 = vmatprep.subr.mxu0 %v139
  %203 = vmatpush1.msra.mxu0 %v138
  %204 = vmatprep.subr.mxu0 %v141
  %205 = vmatpush1.msra.mxu0 %v140
  %206 = vmatprep.subr.mxu0 %v143
  %207 = vmatpush1.msra.mxu0 %v142
  %208 = vmatprep.subr.mxu0 %v145
  %209 = vmatpush1.msra.mxu0 %v144
  %210 = vmatprep.subr.mxu0 %v147
  %211 = vmatpush1.msra.mxu0 %v146
  %212 = vmatprep.mubr.f32.mxu0 %v21
  %213 = vmatmul.mubr.f32.gmra.mrb[0].mxu0 %v20
  %v214 = vpop.f32.mrb[0].mxu0
  %v215 = vadd.f32 0.0, %v214
  %v216 = vpop.f32.mrb[0].mxu0
  %v217 = vadd.f32 0.0, %v216
  %218 = vmatprep.mubr.f32.mxu0 %v23
  %219 = vmatmul.mubr.f32.gmra.mrb[0].mxu0 %v22
  %v220 = vpop.f32.mrb[0].mxu0
  %v221 = vadd.f32 0.0, %v220
  %v222 = vpop.f32.mrb[0].mxu0
  %v223 = vadd.f32 0.0, %v222
  %224 = vmatprep.mubr.f32.mxu0 %v25
  %225 = vmatmul.mubr.f32.gmra.mrb[0].mxu0 %v24
  %v226 = vpop.f32.mrb[0].mxu0
  %v227 = vadd.f32 0.0, %v226
  %v228 = vpop.f32.mrb[0].mxu0
  %v229 = vadd.f32 0.0, %v228
  %230 = vmatprep.mubr.f32.mxu0 %v27
  %231 = vmatmul.mubr.f32.gmra.mrb[0].mxu0 %v26
  %v232 = vpop.f32.mrb[0].mxu0
  %v233 = vadd.f32 0.0, %v232
  %v234 = vpop.f32.mrb[0].mxu0
  %v235 = vadd.f32 0.0, %v234
  %236 = vmatprep.mubr.f32.mxu0 %v29
  %237 = vmatmul.mubr.f32.gmra.mrb[0].mxu0 %v28
  %v238 = vpop.f32.mrb[0].mxu0
  %v239 = vadd.f32 0.0, %v238
  %v240 = vpop.f32.mrb[0].mxu0
  %v241 = vadd.f32 0.0, %v240
  %242 = vmatprep.mubr.f32.mxu0 %v31
  %243 = vmatmul.mubr.f32.gmra.mrb[0].mxu0 %v30
  %v244 = vpop.f32.mrb[0].mxu0
  %v245 = vadd.f32 0.0, %v244
  %v246 = vpop.f32.mrb[0].mxu0
  %v247 = vadd.f32 0.0, %v246
  %248 = vmatprep.mubr.f32.mxu0 %v33
  %249 = vmatmul.mubr.f32.gmra.mrb[0].mxu0 %v32
  %v250 = vpop.f32.mrb[0].mxu0
  %v251 = vadd.f32 0.0, %v250
  %v252 = vpop.f32.mrb[0].mxu0
  %v253 = vadd.f32 0.0, %v252
  %254 = vmatprep.mubr.f32.mxu0 %v35
  %255 = vmatmul.mubr.f32.gmra.mrb[0].mxu0 %v34
  %v256 = vpop.f32.mrb[0].mxu0
  %v257 = vadd.f32 0.0, %v256
  %v258 = vpop.f32.mrb[0].mxu0
  %v259 = vadd.f32 0.0, %v258
  %260 = vmatprep.mubr.f32.mxu0 %v37
  %261 = vmatmul.mubr.f32.gmra.mrb[0].mxu0 %v36
  %v262 = vpop.f32.mrb[0].mxu0
  %v263 = vadd.f32 0.0, %v262
  %v264 = vpop.f32.mrb[0].mxu0
  %v265 = vadd.f32 0.0, %v264
  %266 = vmatprep.mubr.f32.mxu0 %v39
  %267 = vmatmul.mubr.f32.gmra.mrb[0].mxu0 %v38
  %v268 = vpop.f32.mrb[0].mxu0
  %v269 = vadd.f32 0.0, %v268
  %v270 = vpop.f32.mrb[0].mxu0
  %v271 = vadd.f32 0.0, %v270
  %272 = vmatprep.mubr.f32.mxu0 %v41
  %273 = vmatmul.mubr.f32.gmra.mrb[0].mxu0 %v40
  %v274 = vpop.f32.mrb[0].mxu0
  %v275 = vadd.f32 0.0, %v274
  %v276 = vpop.f32.mrb[0].mxu0
  %v277 = vadd.f32 0.0, %v276
  %278 = vmatprep.mubr.f32.mxu0 %v43
  %279 = vmatmul.mubr.f32.gmra.mrb[0].mxu0 %v42
  %v280 = vpop.f32.mrb[0].mxu0
  %v281 = vadd.f32 0.0, %v280
  %v282 = vpop.f32.mrb[0].mxu0
  %v283 = vadd.f32 0.0, %v282
  %284 = vmatprep.mubr.f32.mxu0 %v45
  %285 = vmatmul.mubr.f32.gmra.mrb[0].mxu0 %v44
  %v286 = vpop.f32.mrb[0].mxu0
  %v287 = vadd.f32 0.0, %v286
  %v288 = vpop.f32.mrb[0].mxu0
  %v289 = vadd.f32 0.0, %v288
  %290 = vmatprep.mubr.f32.mxu0 %v47
  %291 = vmatmul.mubr.f32.gmra.mrb[0].mxu0 %v46
  %v292 = vpop.f32.mrb[0].mxu0
  %v293 = vadd.f32 0.0, %v292
  %v294 = vpop.f32.mrb[0].mxu0
  %v295 = vadd.f32 0.0, %v294
  %296 = vmatprep.mubr.f32.mxu0 %v49
  %297 = vmatmul.mubr.f32.gmra.mrb[0].mxu0 %v48
  %v298 = vpop.f32.mrb[0].mxu0
  %v299 = vadd.f32 0.0, %v298
  %v300 = vpop.f32.mrb[0].mxu0
  %v301 = vadd.f32 0.0, %v300
  %302 = vmatprep.mubr.f32.mxu0 %v51
  %303 = vmatmul.mubr.f32.gmra.mrb[0].mxu0 %v50
  %v304 = vpop.f32.mrb[0].mxu0
  %v305 = vadd.f32 0.0, %v304
  %v306 = vpop.f32.mrb[0].mxu0
  %v307 = vadd.f32 0.0, %v306
  %308 = vmatprep.mubr.f32.mxu0 %v53
  %309 = vmatmul.mubr.f32.gmra.mrb[0].mxu0 %v52
  %v310 = vpop.f32.mrb[0].mxu0
  %v311 = vadd.f32 0.0, %v310
  %v312 = vpop.f32.mrb[0].mxu0
  %v313 = vadd.f32 0.0, %v312
  %314 = vmatprep.mubr.f32.mxu0 %v55
  %315 = vmatmul.mubr.f32.gmra.mrb[0].mxu0 %v54
  %v316 = vpop.f32.mrb[0].mxu0
  %v317 = vadd.f32 0.0, %v316
  %v318 = vpop.f32.mrb[0].mxu0
  %v319 = vadd.f32 0.0, %v318
  %320 = vmatprep.mubr.f32.mxu0 %v57
  %321 = vmatmul.mubr.f32.gmra.mrb[0].mxu0 %v56
  %v322 = vpop.f32.mrb[0].mxu0
  %v323 = vadd.f32 0.0, %v322
  %v324 = vpop.f32.mrb[0].mxu0
  %v325 = vadd.f32 0.0, %v324
  %326 = vmatprep.mubr.f32.mxu0 %v59
  %327 = vmatmul.mubr.f32.gmra.mrb[0].mxu0 %v58
  %v328 = vpop.f32.mrb[0].mxu0
  %v329 = vadd.f32 0.0, %v328
  %v330 = vpop.f32.mrb[0].mxu0
  %v331 = vadd.f32 0.0, %v330
  %332 = vmatprep.mubr.f32.mxu0 %v61
  %333 = vmatmul.mubr.f32.gmra.mrb[0].mxu0 %v60
  %v334 = vpop.f32.mrb[0].mxu0
  %v335 = vadd.f32 0.0, %v334
  %v336 = vpop.f32.mrb[0].mxu0
  %v337 = vadd.f32 0.0, %v336
  %338 = vmatprep.mubr.f32.mxu0 %v63
  %339 = vmatmul.mubr.f32.gmra.mrb[0].mxu0 %v62
  %v340 = vpop.f32.mrb[0].mxu0
  %v341 = vadd.f32 0.0, %v340
  %v342 = vpop.f32.mrb[0].mxu0
  %v343 = vadd.f32 0.0, %v342
  %344 = vmatprep.mubr.f32.mxu0 %v65
  %345 = vmatmul.mubr.f32.gmra.mrb[0].mxu0 %v64
  %v346 = vpop.f32.mrb[0].mxu0
  %v347 = vadd.f32 0.0, %v346
  %v348 = vpop.f32.mrb[0].mxu0
  %v349 = vadd.f32 0.0, %v348
  %350 = vmatprep.mubr.f32.mxu0 %v67
  %351 = vmatmul.mubr.f32.gmra.mrb[0].mxu0 %v66
  %v352 = vpop.f32.mrb[0].mxu0
  %v353 = vadd.f32 0.0, %v352
  %v354 = vpop.f32.mrb[0].mxu0
  %v355 = vadd.f32 0.0, %v354
  %356 = vmatprep.mubr.f32.mxu0 %v69
  %357 = vmatmul.mubr.f32.gmra.mrb[0].mxu0 %v68
  %v358 = vpop.f32.mrb[0].mxu0
  %v359 = vadd.f32 0.0, %v358
  %v360 = vpop.f32.mrb[0].mxu0
  %v361 = vadd.f32 0.0, %v360
  %362 = vmatprep.mubr.f32.mxu0 %v71
  %363 = vmatmul.mubr.f32.gmra.mrb[0].mxu0 %v70
  %v364 = vpop.f32.mrb[0].mxu0
  %v365 = vadd.f32 0.0, %v364
  %v366 = vpop.f32.mrb[0].mxu0
  %v367 = vadd.f32 0.0, %v366
  %368 = vmatprep.mubr.f32.mxu0 %v73
  %369 = vmatmul.mubr.f32.gmra.mrb[0].mxu0 %v72
  %v370 = vpop.f32.mrb[0].mxu0
  %v371 = vadd.f32 0.0, %v370
  %v372 = vpop.f32.mrb[0].mxu0
  %v373 = vadd.f32 0.0, %v372
  %374 = vmatprep.mubr.f32.mxu0 %v75
  %375 = vmatmul.mubr.f32.gmra.mrb[0].mxu0 %v74
  %v376 = vpop.f32.mrb[0].mxu0
  %v377 = vadd.f32 0.0, %v376
  %v378 = vpop.f32.mrb[0].mxu0
  %v379 = vadd.f32 0.0, %v378
  %380 = vmatprep.mubr.f32.mxu0 %v77
  %381 = vmatmul.mubr.f32.gmra.mrb[0].mxu0 %v76
  %v382 = vpop.f32.mrb[0].mxu0
  %v383 = vadd.f32 0.0, %v382
  %v384 = vpop.f32.mrb[0].mxu0
  %v385 = vadd.f32 0.0, %v384
  %386 = vmatprep.mubr.f32.mxu0 %v79
  %387 = vmatmul.mubr.f32.gmra.mrb[0].mxu0 %v78
  %v388 = vpop.f32.mrb[0].mxu0
  %v389 = vadd.f32 0.0, %v388
  %v390 = vpop.f32.mrb[0].mxu0
  %v391 = vadd.f32 0.0, %v390
  %392 = vmatprep.mubr.f32.mxu0 %v81
  %393 = vmatmul.mubr.f32.gmra.mrb[0].mxu0 %v80
  %v394 = vpop.f32.mrb[0].mxu0
  %v395 = vadd.f32 0.0, %v394
  %v396 = vpop.f32.mrb[0].mxu0
  %v397 = vadd.f32 0.0, %v396
  %398 = vmatprep.mubr.f32.mxu0 %v83
  %399 = vmatmul.mubr.f32.gmra.mrb[0].mxu0 %v82
  %v400 = vpop.f32.mrb[0].mxu0
  %v401 = vadd.f32 0.0, %v400
  %v402 = vpop.f32.mrb[0].mxu0
  %v403 = vadd.f32 0.0, %v402
  %404 = vdwg.mxu0
  %vm405 = vcmask 556032
  %v406 = vsel %vm405, %v217, 0.0
  %v407 = vadd.f32 %v215, %v406
  %408 = vadd.xlane.f32.xlu0 %v407
  %v409 = vpop.xlane.xlu0 %408
  %v410 = vsel %vm405, %v223, 0.0
  %v411 = vadd.f32 %v221, %v410
  %412 = vadd.xlane.f32.xlu0 %v411
  %v413 = vpop.xlane.xlu0 %412
  %v414 = vsel %vm405, %v229, 0.0
  %v415 = vadd.f32 %v227, %v414
  %416 = vadd.xlane.f32.xlu0 %v415
  %v417 = vpop.xlane.xlu0 %416
  %v418 = vsel %vm405, %v235, 0.0
  %v419 = vadd.f32 %v233, %v418
  %420 = vadd.xlane.f32.xlu0 %v419
  %v421 = vpop.xlane.xlu0 %420
  %v422 = vsel %vm405, %v241, 0.0
  %v423 = vadd.f32 %v239, %v422
  %424 = vadd.xlane.f32.xlu0 %v423
  %v425 = vpop.xlane.xlu0 %424
  %v426 = vsel %vm405, %v247, 0.0
  %v427 = vadd.f32 %v245, %v426
  %428 = vadd.xlane.f32.xlu0 %v427
  %v429 = vpop.xlane.xlu0 %428
  %v430 = vsel %vm405, %v253, 0.0
  %v431 = vadd.f32 %v251, %v430
  %432 = vadd.xlane.f32.xlu0 %v431
  %v433 = vpop.xlane.xlu0 %432
  %v434 = vsel %vm405, %v259, 0.0
  %v435 = vadd.f32 %v257, %v434
  %436 = vadd.xlane.f32.xlu0 %v435
  %v437 = vpop.xlane.xlu0 %436
  %v438 = vsel %vm405, %v265, 0.0
  %v439 = vadd.f32 %v263, %v438
  %440 = vadd.xlane.f32.xlu0 %v439
  %v441 = vpop.xlane.xlu0 %440
  %v442 = vsel %vm405, %v271, 0.0
  %v443 = vadd.f32 %v269, %v442
  %444 = vadd.xlane.f32.xlu0 %v443
  %v445 = vpop.xlane.xlu0 %444
  %v446 = vsel %vm405, %v277, 0.0
  %v447 = vadd.f32 %v275, %v446
  %448 = vadd.xlane.f32.xlu0 %v447
  %v449 = vpop.xlane.xlu0 %448
  %v450 = vsel %vm405, %v283, 0.0
  %v451 = vadd.f32 %v281, %v450
  %452 = vadd.xlane.f32.xlu0 %v451
  %v453 = vpop.xlane.xlu0 %452
  %v454 = vsel %vm405, %v289, 0.0
  %v455 = vadd.f32 %v287, %v454
  %456 = vadd.xlane.f32.xlu0 %v455
  %v457 = vpop.xlane.xlu0 %456
  %v458 = vsel %vm405, %v295, 0.0
  %v459 = vadd.f32 %v293, %v458
  %460 = vadd.xlane.f32.xlu0 %v459
  %v461 = vpop.xlane.xlu0 %460
  %v462 = vsel %vm405, %v301, 0.0
  %v463 = vadd.f32 %v299, %v462
  %464 = vadd.xlane.f32.xlu0 %v463
  %v465 = vpop.xlane.xlu0 %464
  %v466 = vsel %vm405, %v307, 0.0
  %v467 = vadd.f32 %v305, %v466
  %468 = vadd.xlane.f32.xlu0 %v467
  %v469 = vpop.xlane.xlu0 %468
  %v470 = vsel %vm405, %v313, 0.0
  %v471 = vadd.f32 %v311, %v470
  %472 = vadd.xlane.f32.xlu0 %v471
  %v473 = vpop.xlane.xlu0 %472
  %v474 = vsel %vm405, %v319, 0.0
  %v475 = vadd.f32 %v317, %v474
  %476 = vadd.xlane.f32.xlu0 %v475
  %v477 = vpop.xlane.xlu0 %476
  %v478 = vsel %vm405, %v325, 0.0
  %v479 = vadd.f32 %v323, %v478
  %480 = vadd.xlane.f32.xlu0 %v479
  %v481 = vpop.xlane.xlu0 %480
  %v482 = vsel %vm405, %v331, 0.0
  %v483 = vadd.f32 %v329, %v482
  %484 = vadd.xlane.f32.xlu0 %v483
  %v485 = vpop.xlane.xlu0 %484
  %v486 = vsel %vm405, %v337, 0.0
  %v487 = vadd.f32 %v335, %v486
  %488 = vadd.xlane.f32.xlu0 %v487
  %v489 = vpop.xlane.xlu0 %488
  %v490 = vsel %vm405, %v343, 0.0
  %v491 = vadd.f32 %v341, %v490
  %492 = vadd.xlane.f32.xlu0 %v491
  %v493 = vpop.xlane.xlu0 %492
  %v494 = vsel %vm405, %v349, 0.0
  %v495 = vadd.f32 %v347, %v494
  %496 = vadd.xlane.f32.xlu0 %v495
  %v497 = vpop.xlane.xlu0 %496
  %v498 = vsel %vm405, %v355, 0.0
  %v499 = vadd.f32 %v353, %v498
  %500 = vadd.xlane.f32.xlu0 %v499
  %v501 = vpop.xlane.xlu0 %500
  %v502 = vsel %vm405, %v361, 0.0
  %v503 = vadd.f32 %v359, %v502
  %504 = vadd.xlane.f32.xlu0 %v503
  %v505 = vpop.xlane.xlu0 %504
  %v506 = vsel %vm405, %v367, 0.0
  %v507 = vadd.f32 %v365, %v506
  %508 = vadd.xlane.f32.xlu0 %v507
  %v509 = vpop.xlane.xlu0 %508
  %v510 = vsel %vm405, %v373, 0.0
  %v511 = vadd.f32 %v371, %v510
  %512 = vadd.xlane.f32.xlu0 %v511
  %v513 = vpop.xlane.xlu0 %512
  %v514 = vsel %vm405, %v379, 0.0
  %v515 = vadd.f32 %v377, %v514
  %516 = vadd.xlane.f32.xlu0 %v515
  %v517 = vpop.xlane.xlu0 %516
  %v518 = vsel %vm405, %v385, 0.0
  %v519 = vadd.f32 %v383, %v518
  %520 = vadd.xlane.f32.xlu0 %v519
  %v521 = vpop.xlane.xlu0 %520
  %v522 = vsel %vm405, %v391, 0.0
  %v523 = vadd.f32 %v389, %v522
  %524 = vadd.xlane.f32.xlu0 %v523
  %v525 = vpop.xlane.xlu0 %524
  %v526 = vsel %vm405, %v397, 0.0
  %v527 = vadd.f32 %v395, %v526
  %528 = vadd.xlane.f32.xlu0 %v527
  %v529 = vpop.xlane.xlu0 %528
  %v530 = vsel %vm405, %v403, 0.0
  %v531 = vadd.f32 %v401, %v530
  %532 = vadd.xlane.f32.xlu0 %v531
  %v533 = vpop.xlane.xlu0 %532
  %v534 = vmul.f32 %v409, 0.0051020407
  %v535 = vmul.f32 %v413, 0.0051020407
  %v536 = vmul.f32 %v417, 0.0051020407
  %v537 = vmul.f32 %v421, 0.0051020407
  %v538 = vmul.f32 %v425, 0.0051020407
  %v539 = vmul.f32 %v429, 0.0051020407
  %v540 = vmul.f32 %v433, 0.0051020407
  %v541 = vmul.f32 %v437, 0.0051020407
  %v542 = vmul.f32 %v441, 0.0051020407
  %v543 = vmul.f32 %v445, 0.0051020407
  %v544 = vmul.f32 %v449, 0.0051020407
  %v545 = vmul.f32 %v453, 0.0051020407
  %v546 = vmul.f32 %v457, 0.0051020407
  %v547 = vmul.f32 %v461, 0.0051020407
  %v548 = vmul.f32 %v465, 0.0051020407
  %v549 = vmul.f32 %v469, 0.0051020407
  %v550 = vmul.f32 %v473, 0.0051020407
  %v551 = vmul.f32 %v477, 0.0051020407
  %v552 = vmul.f32 %v481, 0.0051020407
  %v553 = vmul.f32 %v485, 0.0051020407
  %v554 = vmul.f32 %v489, 0.0051020407
  %v555 = vmul.f32 %v493, 0.0051020407
  %v556 = vmul.f32 %v497, 0.0051020407
  %v557 = vmul.f32 %v501, 0.0051020407
  %v558 = vmul.f32 %v505, 0.0051020407
  %v559 = vmul.f32 %v509, 0.0051020407
  %v560 = vmul.f32 %v513, 0.0051020407
  %v561 = vmul.f32 %v517, 0.0051020407
  %v562 = vmul.f32 %v521, 0.0051020407
  %v563 = vmul.f32 %v525, 0.0051020407
  %v564 = vmul.f32 %v529, 0.0051020407
  %v565 = vmul.f32 %v533, 0.0051020407
  %v566 = vmul.f32 %v215, %v215
  %v567 = vmul.f32 %v217, %v217
  %v568 = vmul.f32 %v221, %v221
  %v569 = vmul.f32 %v223, %v223
  %v570 = vmul.f32 %v227, %v227
  %v571 = vmul.f32 %v229, %v229
  %v572 = vmul.f32 %v233, %v233
  %v573 = vmul.f32 %v235, %v235
  %v574 = vmul.f32 %v239, %v239
  %v575 = vmul.f32 %v241, %v241
  %v576 = vmul.f32 %v245, %v245
  %v577 = vmul.f32 %v247, %v247
  %v578 = vmul.f32 %v251, %v251
  %v579 = vmul.f32 %v253, %v253
  %v580 = vmul.f32 %v257, %v257
  %v581 = vmul.f32 %v259, %v259
  %v582 = vmul.f32 %v263, %v263
  %v583 = vmul.f32 %v265, %v265
  %v584 = vmul.f32 %v269, %v269
  %v585 = vmul.f32 %v271, %v271
  %v586 = vmul.f32 %v275, %v275
  %v587 = vmul.f32 %v277, %v277
  %v588 = vmul.f32 %v281, %v281
  %v589 = vmul.f32 %v283, %v283
  %v590 = vmul.f32 %v287, %v287
  %v591 = vmul.f32 %v289, %v289
  %v592 = vmul.f32 %v293, %v293
  %v593 = vmul.f32 %v295, %v295
  %v594 = vmul.f32 %v299, %v299
  %v595 = vmul.f32 %v301, %v301
  %v596 = vmul.f32 %v305, %v305
  %v597 = vmul.f32 %v307, %v307
  %v598 = vmul.f32 %v311, %v311
  %v599 = vmul.f32 %v313, %v313
  %v600 = vmul.f32 %v317, %v317
  %v601 = vmul.f32 %v319, %v319
  %v602 = vmul.f32 %v323, %v323
  %v603 = vmul.f32 %v325, %v325
  %v604 = vmul.f32 %v329, %v329
  %v605 = vmul.f32 %v331, %v331
  %v606 = vmul.f32 %v335, %v335
  %v607 = vmul.f32 %v337, %v337
  %v608 = vmul.f32 %v341, %v341
  %v609 = vmul.f32 %v343, %v343
  %v610 = vmul.f32 %v347, %v347
  %v611 = vmul.f32 %v349, %v349
  %v612 = vmul.f32 %v353, %v353
  %v613 = vmul.f32 %v355, %v355
  %v614 = vmul.f32 %v359, %v359
  %v615 = vmul.f32 %v361, %v361
  %v616 = vmul.f32 %v365, %v365
  %v617 = vmul.f32 %v367, %v367
  %v618 = vmul.f32 %v371, %v371
  %v619 = vmul.f32 %v373, %v373
  %v620 = vmul.f32 %v377, %v377
  %v621 = vmul.f32 %v379, %v379
  %v622 = vmul.f32 %v383, %v383
  %v623 = vmul.f32 %v385, %v385
  %v624 = vmul.f32 %v389, %v389
  %v625 = vmul.f32 %v391, %v391
  %v626 = vmul.f32 %v395, %v395
  %v627 = vmul.f32 %v397, %v397
  %v628 = vmul.f32 %v401, %v401
  %v629 = vmul.f32 %v403, %v403
  %v630 = vsel %vm405, %v567, 0.0
  %v631 = vadd.f32 %v566, %v630
  %632 = vadd.xlane.f32.xlu0 %v631
  %v633 = vpop.xlane.xlu0 %632
  %v634 = vsel %vm405, %v569, 0.0
  %v635 = vadd.f32 %v568, %v634
  %636 = vadd.xlane.f32.xlu0 %v635
  %v637 = vpop.xlane.xlu0 %636
  %v638 = vsel %vm405, %v571, 0.0
  %v639 = vadd.f32 %v570, %v638
  %640 = vadd.xlane.f32.xlu0 %v639
  %v641 = vpop.xlane.xlu0 %640
  %v642 = vsel %vm405, %v573, 0.0
  %v643 = vadd.f32 %v572, %v642
  %644 = vadd.xlane.f32.xlu0 %v643
  %v645 = vpop.xlane.xlu0 %644
  %v646 = vsel %vm405, %v575, 0.0
  %v647 = vadd.f32 %v574, %v646
  %648 = vadd.xlane.f32.xlu0 %v647
  %v649 = vpop.xlane.xlu0 %648
  %v650 = vsel %vm405, %v577, 0.0
  %v651 = vadd.f32 %v576, %v650
  %652 = vadd.xlane.f32.xlu0 %v651
  %v653 = vpop.xlane.xlu0 %652
  %v654 = vsel %vm405, %v579, 0.0
  %v655 = vadd.f32 %v578, %v654
  %656 = vadd.xlane.f32.xlu0 %v655
  %v657 = vpop.xlane.xlu0 %656
  %v658 = vsel %vm405, %v581, 0.0
  %v659 = vadd.f32 %v580, %v658
  %660 = vadd.xlane.f32.xlu0 %v659
  %v661 = vpop.xlane.xlu0 %660
  %v662 = vsel %vm405, %v583, 0.0
  %v663 = vadd.f32 %v582, %v662
  %664 = vadd.xlane.f32.xlu0 %v663
  %v665 = vpop.xlane.xlu0 %664
  %v666 = vsel %vm405, %v585, 0.0
  %v667 = vadd.f32 %v584, %v666
  %668 = vadd.xlane.f32.xlu0 %v667
  %v669 = vpop.xlane.xlu0 %668
  %v670 = vsel %vm405, %v587, 0.0
  %v671 = vadd.f32 %v586, %v670
  %672 = vadd.xlane.f32.xlu0 %v671
  %v673 = vpop.xlane.xlu0 %672
  %v674 = vsel %vm405, %v589, 0.0
  %v675 = vadd.f32 %v588, %v674
  %676 = vadd.xlane.f32.xlu0 %v675
  %v677 = vpop.xlane.xlu0 %676
  %v678 = vsel %vm405, %v591, 0.0
  %v679 = vadd.f32 %v590, %v678
  %680 = vadd.xlane.f32.xlu0 %v679
  %v681 = vpop.xlane.xlu0 %680
  %v682 = vsel %vm405, %v593, 0.0
  %v683 = vadd.f32 %v592, %v682
  %684 = vadd.xlane.f32.xlu0 %v683
  %v685 = vpop.xlane.xlu0 %684
  %v686 = vsel %vm405, %v595, 0.0
  %v687 = vadd.f32 %v594, %v686
  %688 = vadd.xlane.f32.xlu0 %v687
  %v689 = vpop.xlane.xlu0 %688
  %v690 = vsel %vm405, %v597, 0.0
  %v691 = vadd.f32 %v596, %v690
  %692 = vadd.xlane.f32.xlu0 %v691
  %v693 = vpop.xlane.xlu0 %692
  %v694 = vsel %vm405, %v599, 0.0
  %v695 = vadd.f32 %v598, %v694
  %696 = vadd.xlane.f32.xlu0 %v695
  %v697 = vpop.xlane.xlu0 %696
  %v698 = vsel %vm405, %v601, 0.0
  %v699 = vadd.f32 %v600, %v698
  %700 = vadd.xlane.f32.xlu0 %v699
  %v701 = vpop.xlane.xlu0 %700
  %v702 = vsel %vm405, %v603, 0.0
  %v703 = vadd.f32 %v602, %v702
  %704 = vadd.xlane.f32.xlu0 %v703
  %v705 = vpop.xlane.xlu0 %704
  %v706 = vsel %vm405, %v605, 0.0
  %v707 = vadd.f32 %v604, %v706
  %708 = vadd.xlane.f32.xlu0 %v707
  %v709 = vpop.xlane.xlu0 %708
  %v710 = vsel %vm405, %v607, 0.0
  %v711 = vadd.f32 %v606, %v710
  %712 = vadd.xlane.f32.xlu0 %v711
  %v713 = vpop.xlane.xlu0 %712
  %v714 = vsel %vm405, %v609, 0.0
  %v715 = vadd.f32 %v608, %v714
  %716 = vadd.xlane.f32.xlu0 %v715
  %v717 = vpop.xlane.xlu0 %716
  %v718 = vsel %vm405, %v611, 0.0
  %v719 = vadd.f32 %v610, %v718
  %720 = vadd.xlane.f32.xlu0 %v719
  %v721 = vpop.xlane.xlu0 %720
  %v722 = vsel %vm405, %v613, 0.0
  %v723 = vadd.f32 %v612, %v722
  %724 = vadd.xlane.f32.xlu0 %v723
  %v725 = vpop.xlane.xlu0 %724
  %v726 = vsel %vm405, %v615, 0.0
  %v727 = vadd.f32 %v614, %v726
  %728 = vadd.xlane.f32.xlu0 %v727
  %v729 = vpop.xlane.xlu0 %728
  %v730 = vsel %vm405, %v617, 0.0
  %v731 = vadd.f32 %v616, %v730
  %732 = vadd.xlane.f32.xlu0 %v731
  %v733 = vpop.xlane.xlu0 %732
  %v734 = vsel %vm405, %v619, 0.0
  %v735 = vadd.f32 %v618, %v734
  %736 = vadd.xlane.f32.xlu0 %v735
  %v737 = vpop.xlane.xlu0 %736
  %v738 = vsel %vm405, %v621, 0.0
  %v739 = vadd.f32 %v620, %v738
  %740 = vadd.xlane.f32.xlu0 %v739
  %v741 = vpop.xlane.xlu0 %740
  %v742 = vsel %vm405, %v623, 0.0
  %v743 = vadd.f32 %v622, %v742
  %744 = vadd.xlane.f32.xlu0 %v743
  %v745 = vpop.xlane.xlu0 %744
  %v746 = vsel %vm405, %v625, 0.0
  %v747 = vadd.f32 %v624, %v746
  %748 = vadd.xlane.f32.xlu0 %v747
  %v749 = vpop.xlane.xlu0 %748
  %v750 = vsel %vm405, %v627, 0.0
  %v751 = vadd.f32 %v626, %v750
  %752 = vadd.xlane.f32.xlu0 %v751
  %v753 = vpop.xlane.xlu0 %752
  %v754 = vsel %vm405, %v629, 0.0
  %v755 = vadd.f32 %v628, %v754
  %756 = vadd.xlane.f32.xlu0 %v755
  %v757 = vpop.xlane.xlu0 %756
  %v758 = vmul.f32 %v633, 0.0051020407
  %v759 = vmul.f32 %v637, 0.0051020407
  %v760 = vmul.f32 %v641, 0.0051020407
  %v761 = vmul.f32 %v645, 0.0051020407
  %v762 = vmul.f32 %v649, 0.0051020407
  %v763 = vmul.f32 %v653, 0.0051020407
  %v764 = vmul.f32 %v657, 0.0051020407
  %v765 = vmul.f32 %v661, 0.0051020407
  %v766 = vmul.f32 %v665, 0.0051020407
  %v767 = vmul.f32 %v669, 0.0051020407
  %v768 = vmul.f32 %v673, 0.0051020407
  %v769 = vmul.f32 %v677, 0.0051020407
  %v770 = vmul.f32 %v681, 0.0051020407
  %v771 = vmul.f32 %v685, 0.0051020407
  %v772 = vmul.f32 %v689, 0.0051020407
  %v773 = vmul.f32 %v693, 0.0051020407
  %v774 = vmul.f32 %v697, 0.0051020407
  %v775 = vmul.f32 %v701, 0.0051020407
  %v776 = vmul.f32 %v705, 0.0051020407
  %v777 = vmul.f32 %v709, 0.0051020407
  %v778 = vmul.f32 %v713, 0.0051020407
  %v779 = vmul.f32 %v717, 0.0051020407
  %v780 = vmul.f32 %v721, 0.0051020407
  %v781 = vmul.f32 %v725, 0.0051020407
  %v782 = vmul.f32 %v729, 0.0051020407
  %v783 = vmul.f32 %v733, 0.0051020407
  %v784 = vmul.f32 %v737, 0.0051020407
  %v785 = vmul.f32 %v741, 0.0051020407
  %v786 = vmul.f32 %v745, 0.0051020407
  %v787 = vmul.f32 %v749, 0.0051020407
  %v788 = vmul.f32 %v753, 0.0051020407
  %v789 = vmul.f32 %v757, 0.0051020407
  %v790 = vmul.f32 %v534, %v534
  %v791 = vmul.f32 %v535, %v535
  %v792 = vmul.f32 %v536, %v536
  %v793 = vmul.f32 %v537, %v537
  %v794 = vmul.f32 %v538, %v538
  %v795 = vmul.f32 %v539, %v539
  %v796 = vmul.f32 %v540, %v540
  %v797 = vmul.f32 %v541, %v541
  %v798 = vmul.f32 %v542, %v542
  %v799 = vmul.f32 %v543, %v543
  %v800 = vmul.f32 %v544, %v544
  %v801 = vmul.f32 %v545, %v545
  %v802 = vmul.f32 %v546, %v546
  %v803 = vmul.f32 %v547, %v547
  %v804 = vmul.f32 %v548, %v548
  %v805 = vmul.f32 %v549, %v549
  %v806 = vmul.f32 %v550, %v550
  %v807 = vmul.f32 %v551, %v551
  %v808 = vmul.f32 %v552, %v552
  %v809 = vmul.f32 %v553, %v553
  %v810 = vmul.f32 %v554, %v554
  %v811 = vmul.f32 %v555, %v555
  %v812 = vmul.f32 %v556, %v556
  %v813 = vmul.f32 %v557, %v557
  %v814 = vmul.f32 %v558, %v558
  %v815 = vmul.f32 %v559, %v559
  %v816 = vmul.f32 %v560, %v560
  %v817 = vmul.f32 %v561, %v561
  %v818 = vmul.f32 %v562, %v562
  %v819 = vmul.f32 %v563, %v563
  %v820 = vmul.f32 %v564, %v564
  %v821 = vmul.f32 %v565, %v565
  %v822 = vsub.f32 %v758, %v790
  %v823 = vsub.f32 %v759, %v791
  %v824 = vsub.f32 %v760, %v792
  %v825 = vsub.f32 %v761, %v793
  %v826 = vsub.f32 %v762, %v794
  %v827 = vsub.f32 %v763, %v795
  %v828 = vsub.f32 %v764, %v796
  %v829 = vsub.f32 %v765, %v797
  %v830 = vsub.f32 %v766, %v798
  %v831 = vsub.f32 %v767, %v799
  %v832 = vsub.f32 %v768, %v800
  %v833 = vsub.f32 %v769, %v801
  %v834 = vsub.f32 %v770, %v802
  %v835 = vsub.f32 %v771, %v803
  %v836 = vsub.f32 %v772, %v804
  %v837 = vsub.f32 %v773, %v805
  %v838 = vsub.f32 %v774, %v806
  %v839 = vsub.f32 %v775, %v807
  %v840 = vsub.f32 %v776, %v808
  %v841 = vsub.f32 %v777, %v809
  %v842 = vsub.f32 %v778, %v810
  %v843 = vsub.f32 %v779, %v811
  %v844 = vsub.f32 %v780, %v812
  %v845 = vsub.f32 %v781, %v813
  %v846 = vsub.f32 %v782, %v814
  %v847 = vsub.f32 %v783, %v815
  %v848 = vsub.f32 %v784, %v816
  %v849 = vsub.f32 %v785, %v817
  %v850 = vsub.f32 %v786, %v818
  %v851 = vsub.f32 %v787, %v819
  %v852 = vsub.f32 %v788, %v820
  %v853 = vsub.f32 %v789, %v821
  %v854 = vmax.f32 %v822, 0.0
  %v855 = vmax.f32 %v823, 0.0
  %v856 = vmax.f32 %v824, 0.0
  %v857 = vmax.f32 %v825, 0.0
  %v858 = vmax.f32 %v826, 0.0
  %v859 = vmax.f32 %v827, 0.0
  %v860 = vmax.f32 %v828, 0.0
  %v861 = vmax.f32 %v829, 0.0
  %v862 = vmax.f32 %v830, 0.0
  %v863 = vmax.f32 %v831, 0.0
  %v864 = vmax.f32 %v832, 0.0
  %v865 = vmax.f32 %v833, 0.0
  %v866 = vmax.f32 %v834, 0.0
  %v867 = vmax.f32 %v835, 0.0
  %v868 = vmax.f32 %v836, 0.0
  %v869 = vmax.f32 %v837, 0.0
  %v870 = vmax.f32 %v838, 0.0
  %v871 = vmax.f32 %v839, 0.0
  %v872 = vmax.f32 %v840, 0.0
  %v873 = vmax.f32 %v841, 0.0
  %v874 = vmax.f32 %v842, 0.0
  %v875 = vmax.f32 %v843, 0.0
  %v876 = vmax.f32 %v844, 0.0
  %v877 = vmax.f32 %v845, 0.0
  %v878 = vmax.f32 %v846, 0.0
  %v879 = vmax.f32 %v847, 0.0
  %v880 = vmax.f32 %v848, 0.0
  %v881 = vmax.f32 %v849, 0.0
  %v882 = vmax.f32 %v850, 0.0
  %v883 = vmax.f32 %v851, 0.0
  %v884 = vmax.f32 %v852, 0.0
  %v885 = vmax.f32 %v853, 0.0
  %v886 = vadd.f32 %v854, 1e-05
  %v887 = vadd.f32 %v855, 1e-05
  %v888 = vadd.f32 %v856, 1e-05
  %v889 = vadd.f32 %v857, 1e-05
  %v890 = vadd.f32 %v858, 1e-05
  %v891 = vadd.f32 %v859, 1e-05
  %v892 = vadd.f32 %v860, 1e-05
  %v893 = vadd.f32 %v861, 1e-05
  %v894 = vadd.f32 %v862, 1e-05
  %v895 = vadd.f32 %v863, 1e-05
  %v896 = vadd.f32 %v864, 1e-05
  %v897 = vadd.f32 %v865, 1e-05
  %v898 = vadd.f32 %v866, 1e-05
  %v899 = vadd.f32 %v867, 1e-05
  %v900 = vadd.f32 %v868, 1e-05
  %v901 = vadd.f32 %v869, 1e-05
  %v902 = vadd.f32 %v870, 1e-05
  %v903 = vadd.f32 %v871, 1e-05
  %v904 = vadd.f32 %v872, 1e-05
  %v905 = vadd.f32 %v873, 1e-05
  %v906 = vadd.f32 %v874, 1e-05
  %v907 = vadd.f32 %v875, 1e-05
  %v908 = vadd.f32 %v876, 1e-05
  %v909 = vadd.f32 %v877, 1e-05
  %v910 = vadd.f32 %v878, 1e-05
  %v911 = vadd.f32 %v879, 1e-05
  %v912 = vadd.f32 %v880, 1e-05
  %v913 = vadd.f32 %v881, 1e-05
  %v914 = vadd.f32 %v882, 1e-05
  %v915 = vadd.f32 %v883, 1e-05
  %v916 = vadd.f32 %v884, 1e-05
  %v917 = vadd.f32 %v885, 1e-05
  %v918 = vrsqrt.pop %v886
  %v919 = vrsqrt.pop %v887
  %v920 = vrsqrt.pop %v888
  %v921 = vrsqrt.pop %v889
  %v922 = vrsqrt.pop %v890
  %v923 = vrsqrt.pop %v891
  %v924 = vrsqrt.pop %v892
  %v925 = vrsqrt.pop %v893
  %v926 = vrsqrt.pop %v894
  %v927 = vrsqrt.pop %v895
  %v928 = vrsqrt.pop %v896
  %v929 = vrsqrt.pop %v897
  %v930 = vrsqrt.pop %v898
  %v931 = vrsqrt.pop %v899
  %v932 = vrsqrt.pop %v900
  %v933 = vrsqrt.pop %v901
  %v934 = vrsqrt.pop %v902
  %v935 = vrsqrt.pop %v903
  %v936 = vrsqrt.pop %v904
  %v937 = vrsqrt.pop %v905
  %v938 = vrsqrt.pop %v906
  %v939 = vrsqrt.pop %v907
  %v940 = vrsqrt.pop %v908
  %v941 = vrsqrt.pop %v909
  %v942 = vrsqrt.pop %v910
  %v943 = vrsqrt.pop %v911
  %v944 = vrsqrt.pop %v912
  %v945 = vrsqrt.pop %v913
  %v946 = vrsqrt.pop %v914
  %v947 = vrsqrt.pop %v915
  %v948 = vrsqrt.pop %v916
  %v949 = vrsqrt.pop %v917
  %v950 = vld [vmem:[%s2] sm:$0xff]
  %v951 = vld [vmem:[%s2 + $0x8] sm:$0xff]
  %v952 = vld [vmem:[%s2 + $0x10] sm:$0xff]
  %v953 = vld [vmem:[%s2 + $0x18] sm:$0xff]
  %v954 = vld [vmem:[%s2 + $0x20] sm:$0xff]
  %v955 = vld [vmem:[%s2 + $0x28] sm:$0xff]
  %v956 = vld [vmem:[%s2 + $0x30] sm:$0xff]
  %v957 = vld [vmem:[%s2 + $0x38] sm:$0xff]
  %v958 = vld [vmem:[%s2 + $0x40] sm:$0xff]
  %v959 = vld [vmem:[%s2 + $0x48] sm:$0xff]
  %v960 = vld [vmem:[%s2 + $0x50] sm:$0xff]
  %v961 = vld [vmem:[%s2 + $0x58] sm:$0xff]
  %v962 = vld [vmem:[%s2 + $0x60] sm:$0xff]
  %v963 = vld [vmem:[%s2 + $0x68] sm:$0xff]
  %v964 = vld [vmem:[%s2 + $0x70] sm:$0xff]
  %v965 = vld [vmem:[%s2 + $0x78] sm:$0xff]
  %v966 = vld [vmem:[%s2 + $0x80] sm:$0xff]
  %v967 = vld [vmem:[%s2 + $0x88] sm:$0xff]
  %v968 = vld [vmem:[%s2 + $0x90] sm:$0xff]
  %v969 = vld [vmem:[%s2 + $0x98] sm:$0xff]
  %v970 = vld [vmem:[%s2 + $0xa0] sm:$0xff]
  %v971 = vld [vmem:[%s2 + $0xa8] sm:$0xff]
  %v972 = vld [vmem:[%s2 + $0xb0] sm:$0xff]
  %v973 = vld [vmem:[%s2 + $0xb8] sm:$0xff]
  %v974 = vld [vmem:[%s2 + $0xc0] sm:$0xff]
  %v975 = vld [vmem:[%s2 + $0xc8] sm:$0xff]
  %v976 = vld [vmem:[%s2 + $0xd0] sm:$0xff]
  %v977 = vld [vmem:[%s2 + $0xd8] sm:$0xff]
  %v978 = vld [vmem:[%s2 + $0xe0] sm:$0xff]
  %v979 = vld [vmem:[%s2 + $0xe8] sm:$0xff]
  %v980 = vld [vmem:[%s2 + $0xf0] sm:$0xff]
  %v981 = vld [vmem:[%s2 + $0xf8] sm:$0xff]
  %v982 = vmul.f32 %v918, %v950
  %v983 = vmul.f32 %v919, %v951
  %v984 = vmul.f32 %v920, %v952
  %v985 = vmul.f32 %v921, %v953
  %v986 = vmul.f32 %v922, %v954
  %v987 = vmul.f32 %v923, %v955
  %v988 = vmul.f32 %v924, %v956
  %v989 = vmul.f32 %v925, %v957
  %v990 = vmul.f32 %v926, %v958
  %v991 = vmul.f32 %v927, %v959
  %v992 = vmul.f32 %v928, %v960
  %v993 = vmul.f32 %v929, %v961
  %v994 = vmul.f32 %v930, %v962
  %v995 = vmul.f32 %v931, %v963
  %v996 = vmul.f32 %v932, %v964
  %v997 = vmul.f32 %v933, %v965
  %v998 = vmul.f32 %v934, %v966
  %v999 = vmul.f32 %v935, %v967
  %v1000 = vmul.f32 %v936, %v968
  %v1001 = vmul.f32 %v937, %v969
  %v1002 = vmul.f32 %v938, %v970
  %v1003 = vmul.f32 %v939, %v971
  %v1004 = vmul.f32 %v940, %v972
  %v1005 = vmul.f32 %v941, %v973
  %v1006 = vmul.f32 %v942, %v974
  %v1007 = vmul.f32 %v943, %v975
  %v1008 = vmul.f32 %v944, %v976
  %v1009 = vmul.f32 %v945, %v977
  %v1010 = vmul.f32 %v946, %v978
  %v1011 = vmul.f32 %v947, %v979
  %v1012 = vmul.f32 %v948, %v980
  %v1013 = vmul.f32 %v949, %v981
  %v1014 = vld [vmem:[%s3] sm:$0xff]
  %v1015 = vld [vmem:[%s3 + $0x8] sm:$0xff]
  %v1016 = vld [vmem:[%s3 + $0x10] sm:$0xff]
  %v1017 = vld [vmem:[%s3 + $0x18] sm:$0xff]
  %v1018 = vld [vmem:[%s3 + $0x20] sm:$0xff]
  %v1019 = vld [vmem:[%s3 + $0x28] sm:$0xff]
  %v1020 = vld [vmem:[%s3 + $0x30] sm:$0xff]
  %v1021 = vld [vmem:[%s3 + $0x38] sm:$0xff]
  %v1022 = vld [vmem:[%s3 + $0x40] sm:$0xff]
  %v1023 = vld [vmem:[%s3 + $0x48] sm:$0xff]
  %v1024 = vld [vmem:[%s3 + $0x50] sm:$0xff]
  %v1025 = vld [vmem:[%s3 + $0x58] sm:$0xff]
  %v1026 = vld [vmem:[%s3 + $0x60] sm:$0xff]
  %v1027 = vld [vmem:[%s3 + $0x68] sm:$0xff]
  %v1028 = vld [vmem:[%s3 + $0x70] sm:$0xff]
  %v1029 = vld [vmem:[%s3 + $0x78] sm:$0xff]
  %v1030 = vld [vmem:[%s3 + $0x80] sm:$0xff]
  %v1031 = vld [vmem:[%s3 + $0x88] sm:$0xff]
  %v1032 = vld [vmem:[%s3 + $0x90] sm:$0xff]
  %v1033 = vld [vmem:[%s3 + $0x98] sm:$0xff]
  %v1034 = vld [vmem:[%s3 + $0xa0] sm:$0xff]
  %v1035 = vld [vmem:[%s3 + $0xa8] sm:$0xff]
  %v1036 = vld [vmem:[%s3 + $0xb0] sm:$0xff]
  %v1037 = vld [vmem:[%s3 + $0xb8] sm:$0xff]
  %v1038 = vld [vmem:[%s3 + $0xc0] sm:$0xff]
  %v1039 = vld [vmem:[%s3 + $0xc8] sm:$0xff]
  %v1040 = vld [vmem:[%s3 + $0xd0] sm:$0xff]
  %v1041 = vld [vmem:[%s3 + $0xd8] sm:$0xff]
  %v1042 = vld [vmem:[%s3 + $0xe0] sm:$0xff]
  %v1043 = vld [vmem:[%s3 + $0xe8] sm:$0xff]
  %v1044 = vld [vmem:[%s3 + $0xf0] sm:$0xff]
  %v1045 = vld [vmem:[%s3 + $0xf8] sm:$0xff]
  %v1046 = vmul.f32 %v534, %v982
  %v1047 = vmul.f32 %v535, %v983
  %v1048 = vmul.f32 %v536, %v984
  %v1049 = vmul.f32 %v537, %v985
  %v1050 = vmul.f32 %v538, %v986
  %v1051 = vmul.f32 %v539, %v987
  %v1052 = vmul.f32 %v540, %v988
  %v1053 = vmul.f32 %v541, %v989
  %v1054 = vmul.f32 %v542, %v990
  %v1055 = vmul.f32 %v543, %v991
  %v1056 = vmul.f32 %v544, %v992
  %v1057 = vmul.f32 %v545, %v993
  %v1058 = vmul.f32 %v546, %v994
  %v1059 = vmul.f32 %v547, %v995
  %v1060 = vmul.f32 %v548, %v996
  %v1061 = vmul.f32 %v549, %v997
  %v1062 = vmul.f32 %v550, %v998
  %v1063 = vmul.f32 %v551, %v999
  %v1064 = vmul.f32 %v552, %v1000
  %v1065 = vmul.f32 %v553, %v1001
  %v1066 = vmul.f32 %v554, %v1002
  %v1067 = vmul.f32 %v555, %v1003
  %v1068 = vmul.f32 %v556, %v1004
  %v1069 = vmul.f32 %v557, %v1005
  %v1070 = vmul.f32 %v558, %v1006
  %v1071 = vmul.f32 %v559, %v1007
  %v1072 = vmul.f32 %v560, %v1008
  %v1073 = vmul.f32 %v561, %v1009
  %v1074 = vmul.f32 %v562, %v1010
  %v1075 = vmul.f32 %v563, %v1011
  %v1076 = vmul.f32 %v564, %v1012
  %v1077 = vmul.f32 %v565, %v1013
  %v1078 = vsub.f32 %v1014, %v1046
  %v1079 = vsub.f32 %v1015, %v1047
  %v1080 = vsub.f32 %v1016, %v1048
  %v1081 = vsub.f32 %v1017, %v1049
  %v1082 = vsub.f32 %v1018, %v1050
  %v1083 = vsub.f32 %v1019, %v1051
  %v1084 = vsub.f32 %v1020, %v1052
  %v1085 = vsub.f32 %v1021, %v1053
  %v1086 = vsub.f32 %v1022, %v1054
  %v1087 = vsub.f32 %v1023, %v1055
  %v1088 = vsub.f32 %v1024, %v1056
  %v1089 = vsub.f32 %v1025, %v1057
  %v1090 = vsub.f32 %v1026, %v1058
  %v1091 = vsub.f32 %v1027, %v1059
  %v1092 = vsub.f32 %v1028, %v1060
  %v1093 = vsub.f32 %v1029, %v1061
  %v1094 = vsub.f32 %v1030, %v1062
  %v1095 = vsub.f32 %v1031, %v1063
  %v1096 = vsub.f32 %v1032, %v1064
  %v1097 = vsub.f32 %v1033, %v1065
  %v1098 = vsub.f32 %v1034, %v1066
  %v1099 = vsub.f32 %v1035, %v1067
  %v1100 = vsub.f32 %v1036, %v1068
  %v1101 = vsub.f32 %v1037, %v1069
  %v1102 = vsub.f32 %v1038, %v1070
  %v1103 = vsub.f32 %v1039, %v1071
  %v1104 = vsub.f32 %v1040, %v1072
  %v1105 = vsub.f32 %v1041, %v1073
  %v1106 = vsub.f32 %v1042, %v1074
  %v1107 = vsub.f32 %v1043, %v1075
  %v1108 = vsub.f32 %v1044, %v1076
  %v1109 = vsub.f32 %v1045, %v1077
  %v1110 = vld [vmem:[%s4] sm:$0xff]
  %v1111 = vld [vmem:[%s4 + $0x8] sm:$0xff]
  %v1112 = vld [vmem:[%s4 + $0x10] sm:$0xff]
  %v1113 = vld [vmem:[%s4 + $0x18] sm:$0xff]
  %v1114 = vld [vmem:[%s4 + $0x20] sm:$0xff]
  %v1115 = vld [vmem:[%s4 + $0x28] sm:$0xff]
  %v1116 = vld [vmem:[%s4 + $0x30] sm:$0xff]
  %v1117 = vld [vmem:[%s4 + $0x38] sm:$0xff]
  %v1118 = vld [vmem:[%s4 + $0x40] sm:$0xff]
  %v1119 = vld [vmem:[%s4 + $0x48] sm:$0xff]
  %v1120 = vld [vmem:[%s4 + $0x50] sm:$0xff]
  %v1121 = vld [vmem:[%s4 + $0x58] sm:$0xff]
  %v1122 = vld [vmem:[%s4 + $0x60] sm:$0xff]
  %v1123 = vld [vmem:[%s4 + $0x68] sm:$0xff]
  %v1124 = vld [vmem:[%s4 + $0x70] sm:$0xff]
  %v1125 = vld [vmem:[%s4 + $0x78] sm:$0xff]
  %v1126 = vld [vmem:[%s4 + $0x80] sm:$0xff]
  %v1127 = vld [vmem:[%s4 + $0x88] sm:$0xff]
  %v1128 = vld [vmem:[%s4 + $0x90] sm:$0xff]
  %v1129 = vld [vmem:[%s4 + $0x98] sm:$0xff]
  %v1130 = vld [vmem:[%s4 + $0xa0] sm:$0xff]
  %v1131 = vld [vmem:[%s4 + $0xa8] sm:$0xff]
  %v1132 = vld [vmem:[%s4 + $0xb0] sm:$0xff]
  %v1133 = vld [vmem:[%s4 + $0xb8] sm:$0xff]
  %v1134 = vld [vmem:[%s4 + $0xc0] sm:$0xff]
  %v1135 = vld [vmem:[%s4 + $0xc8] sm:$0xff]
  %v1136 = vld [vmem:[%s4 + $0xd0] sm:$0xff]
  %v1137 = vld [vmem:[%s4 + $0xd8] sm:$0xff]
  %v1138 = vld [vmem:[%s4 + $0xe0] sm:$0xff]
  %v1139 = vld [vmem:[%s4 + $0xe8] sm:$0xff]
  %v1140 = vld [vmem:[%s4 + $0xf0] sm:$0xff]
  %v1141 = vld [vmem:[%s4 + $0xf8] sm:$0xff]
  %v1142 = vld [vmem:[%s4 + $0x100] sm:$0xff]
  %v1143 = vld [vmem:[%s4 + $0x108] sm:$0xff]
  %v1144 = vld [vmem:[%s4 + $0x110] sm:$0xff]
  %v1145 = vld [vmem:[%s4 + $0x118] sm:$0xff]
  %v1146 = vld [vmem:[%s4 + $0x120] sm:$0xff]
  %v1147 = vld [vmem:[%s4 + $0x128] sm:$0xff]
  %v1148 = vld [vmem:[%s4 + $0x130] sm:$0xff]
  %v1149 = vld [vmem:[%s4 + $0x138] sm:$0xff]
  %v1150 = vld [vmem:[%s4 + $0x140] sm:$0xff]
  %v1151 = vld [vmem:[%s4 + $0x148] sm:$0xff]
  %v1152 = vld [vmem:[%s4 + $0x150] sm:$0xff]
  %v1153 = vld [vmem:[%s4 + $0x158] sm:$0xff]
  %v1154 = vld [vmem:[%s4 + $0x160] sm:$0xff]
  %v1155 = vld [vmem:[%s4 + $0x168] sm:$0xff]
  %v1156 = vld [vmem:[%s4 + $0x170] sm:$0xff]
  %v1157 = vld [vmem:[%s4 + $0x178] sm:$0xff]
  %v1158 = vld [vmem:[%s4 + $0x180] sm:$0xff]
  %v1159 = vld [vmem:[%s4 + $0x188] sm:$0xff]
  %v1160 = vld [vmem:[%s4 + $0x190] sm:$0xff]
  %v1161 = vld [vmem:[%s4 + $0x198] sm:$0xff]
  %v1162 = vld [vmem:[%s4 + $0x1a0] sm:$0xff]
  %v1163 = vld [vmem:[%s4 + $0x1a8] sm:$0xff]
  %v1164 = vld [vmem:[%s4 + $0x1b0] sm:$0xff]
  %v1165 = vld [vmem:[%s4 + $0x1b8] sm:$0xff]
  %v1166 = vld [vmem:[%s4 + $0x1c0] sm:$0xff]
  %v1167 = vld [vmem:[%s4 + $0x1c8] sm:$0xff]
  %v1168 = vld [vmem:[%s4 + $0x1d0] sm:$0xff]
  %v1169 = vld [vmem:[%s4 + $0x1d8] sm:$0xff]
  %v1170 = vld [vmem:[%s4 + $0x1e0] sm:$0xff]
  %v1171 = vld [vmem:[%s4 + $0x1e8] sm:$0xff]
  %v1172 = vld [vmem:[%s4 + $0x1f0] sm:$0xff]
  %v1173 = vld [vmem:[%s4 + $0x1f8] sm:$0xff]
  %1175 = vset.pattern.permute.xlu0 0
  %1176 = vperm.xlu0 %1175, %v982
  %v1177 = vpop.permute.xlu0 %1176
  %1180 = vset.pattern.permute.xlu0 0
  %1181 = vperm.xlu0 %1180, %v983
  %v1182 = vpop.permute.xlu0 %1181
  %1185 = vset.pattern.permute.xlu0 0
  %1186 = vperm.xlu0 %1185, %v984
  %v1187 = vpop.permute.xlu0 %1186
  %1190 = vset.pattern.permute.xlu0 0
  %1191 = vperm.xlu0 %1190, %v985
  %v1192 = vpop.permute.xlu0 %1191
  %1195 = vset.pattern.permute.xlu0 0
  %1196 = vperm.xlu0 %1195, %v986
  %v1197 = vpop.permute.xlu0 %1196
  %1200 = vset.pattern.permute.xlu0 0
  %1201 = vperm.xlu0 %1200, %v987
  %v1202 = vpop.permute.xlu0 %1201
  %1205 = vset.pattern.permute.xlu0 0
  %1206 = vperm.xlu0 %1205, %v988
  %v1207 = vpop.permute.xlu0 %1206
  %1210 = vset.pattern.permute.xlu0 0
  %1211 = vperm.xlu0 %1210, %v989
  %v1212 = vpop.permute.xlu0 %1211
  %1215 = vset.pattern.permute.xlu0 0
  %1216 = vperm.xlu0 %1215, %v990
  %v1217 = vpop.permute.xlu0 %1216
  %1220 = vset.pattern.permute.xlu0 0
  %1221 = vperm.xlu0 %1220, %v991
  %v1222 = vpop.permute.xlu0 %1221
  %1225 = vset.pattern.permute.xlu0 0
  %1226 = vperm.xlu0 %1225, %v992
  %v1227 = vpop.permute.xlu0 %1226
  %1230 = vset.pattern.permute.xlu0 0
  %1231 = vperm.xlu0 %1230, %v993
  %v1232 = vpop.permute.xlu0 %1231
  %1235 = vset.pattern.permute.xlu0 0
  %1236 = vperm.xlu0 %1235, %v994
  %v1237 = vpop.permute.xlu0 %1236
  %1240 = vset.pattern.permute.xlu0 0
  %1241 = vperm.xlu0 %1240, %v995
  %v1242 = vpop.permute.xlu0 %1241
  %1245 = vset.pattern.permute.xlu0 0
  %1246 = vperm.xlu0 %1245, %v996
  %v1247 = vpop.permute.xlu0 %1246
  %1250 = vset.pattern.permute.xlu0 0
  %1251 = vperm.xlu0 %1250, %v997
  %v1252 = vpop.permute.xlu0 %1251
  %1255 = vset.pattern.permute.xlu0 0
  %1256 = vperm.xlu0 %1255, %v998
  %v1257 = vpop.permute.xlu0 %1256
  %1260 = vset.pattern.permute.xlu0 0
  %1261 = vperm.xlu0 %1260, %v999
  %v1262 = vpop.permute.xlu0 %1261
  %1265 = vset.pattern.permute.xlu0 0
  %1266 = vperm.xlu0 %1265, %v1000
  %v1267 = vpop.permute.xlu0 %1266
  %1270 = vset.pattern.permute.xlu0 0
  %1271 = vperm.xlu0 %1270, %v1001
  %v1272 = vpop.permute.xlu0 %1271
  %1275 = vset.pattern.permute.xlu0 0
  %1276 = vperm.xlu0 %1275, %v1002
  %v1277 = vpop.permute.xlu0 %1276
  %1280 = vset.pattern.permute.xlu0 0
  %1281 = vperm.xlu0 %1280, %v1003
  %v1282 = vpop.permute.xlu0 %1281
  %1285 = vset.pattern.permute.xlu0 0
  %1286 = vperm.xlu0 %1285, %v1004
  %v1287 = vpop.permute.xlu0 %1286
  %1290 = vset.pattern.permute.xlu0 0
  %1291 = vperm.xlu0 %1290, %v1005
  %v1292 = vpop.permute.xlu0 %1291
  %1295 = vset.pattern.permute.xlu0 0
  %1296 = vperm.xlu0 %1295, %v1006
  %v1297 = vpop.permute.xlu0 %1296
  %1300 = vset.pattern.permute.xlu0 0
  %1301 = vperm.xlu0 %1300, %v1007
  %v1302 = vpop.permute.xlu0 %1301
  %1305 = vset.pattern.permute.xlu0 0
  %1306 = vperm.xlu0 %1305, %v1008
  %v1307 = vpop.permute.xlu0 %1306
  %1310 = vset.pattern.permute.xlu0 0
  %1311 = vperm.xlu0 %1310, %v1009
  %v1312 = vpop.permute.xlu0 %1311
  %1315 = vset.pattern.permute.xlu0 0
  %1316 = vperm.xlu0 %1315, %v1010
  %v1317 = vpop.permute.xlu0 %1316
  %1320 = vset.pattern.permute.xlu0 0
  %1321 = vperm.xlu0 %1320, %v1011
  %v1322 = vpop.permute.xlu0 %1321
  %1325 = vset.pattern.permute.xlu0 0
  %1326 = vperm.xlu0 %1325, %v1012
  %v1327 = vpop.permute.xlu0 %1326
  %1330 = vset.pattern.permute.xlu0 0
  %1331 = vperm.xlu0 %1330, %v1013
  %v1332 = vpop.permute.xlu0 %1331
  %v1334 = vmul.f32 %v215, %v1177
  %v1335 = vmul.f32 %v217, %v1177
  %v1336 = vmul.f32 %v221, %v1182
  %v1337 = vmul.f32 %v223, %v1182
  %v1338 = vmul.f32 %v227, %v1187
  %v1339 = vmul.f32 %v229, %v1187
  %v1340 = vmul.f32 %v233, %v1192
  %v1341 = vmul.f32 %v235, %v1192
  %v1342 = vmul.f32 %v239, %v1197
  %v1343 = vmul.f32 %v241, %v1197
  %v1344 = vmul.f32 %v245, %v1202
  %v1345 = vmul.f32 %v247, %v1202
  %v1346 = vmul.f32 %v251, %v1207
  %v1347 = vmul.f32 %v253, %v1207
  %v1348 = vmul.f32 %v257, %v1212
  %v1349 = vmul.f32 %v259, %v1212
  %v1350 = vmul.f32 %v263, %v1217
  %v1351 = vmul.f32 %v265, %v1217
  %v1352 = vmul.f32 %v269, %v1222
  %v1353 = vmul.f32 %v271, %v1222
  %v1354 = vmul.f32 %v275, %v1227
  %v1355 = vmul.f32 %v277, %v1227
  %v1356 = vmul.f32 %v281, %v1232
  %v1357 = vmul.f32 %v283, %v1232
  %v1358 = vmul.f32 %v287, %v1237
  %v1359 = vmul.f32 %v289, %v1237
  %v1360 = vmul.f32 %v293, %v1242
  %v1361 = vmul.f32 %v295, %v1242
  %v1362 = vmul.f32 %v299, %v1247
  %v1363 = vmul.f32 %v301, %v1247
  %v1364 = vmul.f32 %v305, %v1252
  %v1365 = vmul.f32 %v307, %v1252
  %v1366 = vmul.f32 %v311, %v1257
  %v1367 = vmul.f32 %v313, %v1257
  %v1368 = vmul.f32 %v317, %v1262
  %v1369 = vmul.f32 %v319, %v1262
  %v1370 = vmul.f32 %v323, %v1267
  %v1371 = vmul.f32 %v325, %v1267
  %v1372 = vmul.f32 %v329, %v1272
  %v1373 = vmul.f32 %v331, %v1272
  %v1374 = vmul.f32 %v335, %v1277
  %v1375 = vmul.f32 %v337, %v1277
  %v1376 = vmul.f32 %v341, %v1282
  %v1377 = vmul.f32 %v343, %v1282
  %v1378 = vmul.f32 %v347, %v1287
  %v1379 = vmul.f32 %v349, %v1287
  %v1380 = vmul.f32 %v353, %v1292
  %v1381 = vmul.f32 %v355, %v1292
  %v1382 = vmul.f32 %v359, %v1297
  %v1383 = vmul.f32 %v361, %v1297
  %v1384 = vmul.f32 %v365, %v1302
  %v1385 = vmul.f32 %v367, %v1302
  %v1386 = vmul.f32 %v371, %v1307
  %v1387 = vmul.f32 %v373, %v1307
  %v1388 = vmul.f32 %v377, %v1312
  %v1389 = vmul.f32 %v379, %v1312
  %v1390 = vmul.f32 %v383, %v1317
  %v1391 = vmul.f32 %v385, %v1317
  %v1392 = vmul.f32 %v389, %v1322
  %v1393 = vmul.f32 %v391, %v1322
  %v1394 = vmul.f32 %v395, %v1327
  %v1395 = vmul.f32 %v397, %v1327
  %v1396 = vmul.f32 %v401, %v1332
  %v1397 = vmul.f32 %v403, %v1332
  %v1398 = vadd.f32 %v1110, %v1334
  %v1399 = vadd.f32 %v1111, %v1335
  %v1400 = vadd.f32 %v1112, %v1336
  %v1401 = vadd.f32 %v1113, %v1337
  %v1402 = vadd.f32 %v1114, %v1338
  %v1403 = vadd.f32 %v1115, %v1339
  %v1404 = vadd.f32 %v1116, %v1340
  %v1405 = vadd.f32 %v1117, %v1341
  %v1406 = vadd.f32 %v1118, %v1342
  %v1407 = vadd.f32 %v1119, %v1343
  %v1408 = vadd.f32 %v1120, %v1344
  %v1409 = vadd.f32 %v1121, %v1345
  %v1410 = vadd.f32 %v1122, %v1346
  %v1411 = vadd.f32 %v1123, %v1347
  %v1412 = vadd.f32 %v1124, %v1348
  %v1413 = vadd.f32 %v1125, %v1349
  %v1414 = vadd.f32 %v1126, %v1350
  %v1415 = vadd.f32 %v1127, %v1351
  %v1416 = vadd.f32 %v1128, %v1352
  %v1417 = vadd.f32 %v1129, %v1353
  %v1418 = vadd.f32 %v1130, %v1354
  %v1419 = vadd.f32 %v1131, %v1355
  %v1420 = vadd.f32 %v1132, %v1356
  %v1421 = vadd.f32 %v1133, %v1357
  %v1422 = vadd.f32 %v1134, %v1358
  %v1423 = vadd.f32 %v1135, %v1359
  %v1424 = vadd.f32 %v1136, %v1360
  %v1425 = vadd.f32 %v1137, %v1361
  %v1426 = vadd.f32 %v1138, %v1362
  %v1427 = vadd.f32 %v1139, %v1363
  %v1428 = vadd.f32 %v1140, %v1364
  %v1429 = vadd.f32 %v1141, %v1365
  %v1430 = vadd.f32 %v1142, %v1366
  %v1431 = vadd.f32 %v1143, %v1367
  %v1432 = vadd.f32 %v1144, %v1368
  %v1433 = vadd.f32 %v1145, %v1369
  %v1434 = vadd.f32 %v1146, %v1370
  %v1435 = vadd.f32 %v1147, %v1371
  %v1436 = vadd.f32 %v1148, %v1372
  %v1437 = vadd.f32 %v1149, %v1373
  %v1438 = vadd.f32 %v1150, %v1374
  %v1439 = vadd.f32 %v1151, %v1375
  %v1440 = vadd.f32 %v1152, %v1376
  %v1441 = vadd.f32 %v1153, %v1377
  %v1442 = vadd.f32 %v1154, %v1378
  %v1443 = vadd.f32 %v1155, %v1379
  %v1444 = vadd.f32 %v1156, %v1380
  %v1445 = vadd.f32 %v1157, %v1381
  %v1446 = vadd.f32 %v1158, %v1382
  %v1447 = vadd.f32 %v1159, %v1383
  %v1448 = vadd.f32 %v1160, %v1384
  %v1449 = vadd.f32 %v1161, %v1385
  %v1450 = vadd.f32 %v1162, %v1386
  %v1451 = vadd.f32 %v1163, %v1387
  %v1452 = vadd.f32 %v1164, %v1388
  %v1453 = vadd.f32 %v1165, %v1389
  %v1454 = vadd.f32 %v1166, %v1390
  %v1455 = vadd.f32 %v1167, %v1391
  %v1456 = vadd.f32 %v1168, %v1392
  %v1457 = vadd.f32 %v1169, %v1393
  %v1458 = vadd.f32 %v1170, %v1394
  %v1459 = vadd.f32 %v1171, %v1395
  %v1460 = vadd.f32 %v1172, %v1396
  %v1461 = vadd.f32 %v1173, %v1397
  %1463 = vset.pattern.permute.xlu0 0
  %1464 = vperm.xlu0 %1463, %v1078
  %v1465 = vpop.permute.xlu0 %1464
  %1468 = vset.pattern.permute.xlu0 0
  %1469 = vperm.xlu0 %1468, %v1079
  %v1470 = vpop.permute.xlu0 %1469
  %1473 = vset.pattern.permute.xlu0 0
  %1474 = vperm.xlu0 %1473, %v1080
  %v1475 = vpop.permute.xlu0 %1474
  %1478 = vset.pattern.permute.xlu0 0
  %1479 = vperm.xlu0 %1478, %v1081
  %v1480 = vpop.permute.xlu0 %1479
  %1483 = vset.pattern.permute.xlu0 0
  %1484 = vperm.xlu0 %1483, %v1082
  %v1485 = vpop.permute.xlu0 %1484
  %1488 = vset.pattern.permute.xlu0 0
  %1489 = vperm.xlu0 %1488, %v1083
  %v1490 = vpop.permute.xlu0 %1489
  %1493 = vset.pattern.permute.xlu0 0
  %1494 = vperm.xlu0 %1493, %v1084
  %v1495 = vpop.permute.xlu0 %1494
  %1498 = vset.pattern.permute.xlu0 0
  %1499 = vperm.xlu0 %1498, %v1085
  %v1500 = vpop.permute.xlu0 %1499
  %1503 = vset.pattern.permute.xlu0 0
  %1504 = vperm.xlu0 %1503, %v1086
  %v1505 = vpop.permute.xlu0 %1504
  %1508 = vset.pattern.permute.xlu0 0
  %1509 = vperm.xlu0 %1508, %v1087
  %v1510 = vpop.permute.xlu0 %1509
  %1513 = vset.pattern.permute.xlu0 0
  %1514 = vperm.xlu0 %1513, %v1088
  %v1515 = vpop.permute.xlu0 %1514
  %1518 = vset.pattern.permute.xlu0 0
  %1519 = vperm.xlu0 %1518, %v1089
  %v1520 = vpop.permute.xlu0 %1519
  %1523 = vset.pattern.permute.xlu0 0
  %1524 = vperm.xlu0 %1523, %v1090
  %v1525 = vpop.permute.xlu0 %1524
  %1528 = vset.pattern.permute.xlu0 0
  %1529 = vperm.xlu0 %1528, %v1091
  %v1530 = vpop.permute.xlu0 %1529
  %1533 = vset.pattern.permute.xlu0 0
  %1534 = vperm.xlu0 %1533, %v1092
  %v1535 = vpop.permute.xlu0 %1534
  %1538 = vset.pattern.permute.xlu0 0
  %1539 = vperm.xlu0 %1538, %v1093
  %v1540 = vpop.permute.xlu0 %1539
  %1543 = vset.pattern.permute.xlu0 0
  %1544 = vperm.xlu0 %1543, %v1094
  %v1545 = vpop.permute.xlu0 %1544
  %1548 = vset.pattern.permute.xlu0 0
  %1549 = vperm.xlu0 %1548, %v1095
  %v1550 = vpop.permute.xlu0 %1549
  %1553 = vset.pattern.permute.xlu0 0
  %1554 = vperm.xlu0 %1553, %v1096
  %v1555 = vpop.permute.xlu0 %1554
  %1558 = vset.pattern.permute.xlu0 0
  %1559 = vperm.xlu0 %1558, %v1097
  %v1560 = vpop.permute.xlu0 %1559
  %1563 = vset.pattern.permute.xlu0 0
  %1564 = vperm.xlu0 %1563, %v1098
  %v1565 = vpop.permute.xlu0 %1564
  %1568 = vset.pattern.permute.xlu0 0
  %1569 = vperm.xlu0 %1568, %v1099
  %v1570 = vpop.permute.xlu0 %1569
  %1573 = vset.pattern.permute.xlu0 0
  %1574 = vperm.xlu0 %1573, %v1100
  %v1575 = vpop.permute.xlu0 %1574
  %1578 = vset.pattern.permute.xlu0 0
  %1579 = vperm.xlu0 %1578, %v1101
  %v1580 = vpop.permute.xlu0 %1579
  %1583 = vset.pattern.permute.xlu0 0
  %1584 = vperm.xlu0 %1583, %v1102
  %v1585 = vpop.permute.xlu0 %1584
  %1588 = vset.pattern.permute.xlu0 0
  %1589 = vperm.xlu0 %1588, %v1103
  %v1590 = vpop.permute.xlu0 %1589
  %1593 = vset.pattern.permute.xlu0 0
  %1594 = vperm.xlu0 %1593, %v1104
  %v1595 = vpop.permute.xlu0 %1594
  %1598 = vset.pattern.permute.xlu0 0
  %1599 = vperm.xlu0 %1598, %v1105
  %v1600 = vpop.permute.xlu0 %1599
  %1603 = vset.pattern.permute.xlu0 0
  %1604 = vperm.xlu0 %1603, %v1106
  %v1605 = vpop.permute.xlu0 %1604
  %1608 = vset.pattern.permute.xlu0 0
  %1609 = vperm.xlu0 %1608, %v1107
  %v1610 = vpop.permute.xlu0 %1609
  %1613 = vset.pattern.permute.xlu0 0
  %1614 = vperm.xlu0 %1613, %v1108
  %v1615 = vpop.permute.xlu0 %1614
  %1618 = vset.pattern.permute.xlu0 0
  %1619 = vperm.xlu0 %1618, %v1109
  %v1620 = vpop.permute.xlu0 %1619
  %v1622 = vadd.f32 %v1398, %v1465
  %v1623 = vadd.f32 %v1399, %v1465
  %v1624 = vadd.f32 %v1400, %v1470
  %v1625 = vadd.f32 %v1401, %v1470
  %v1626 = vadd.f32 %v1402, %v1475
  %v1627 = vadd.f32 %v1403, %v1475
  %v1628 = vadd.f32 %v1404, %v1480
  %v1629 = vadd.f32 %v1405, %v1480
  %v1630 = vadd.f32 %v1406, %v1485
  %v1631 = vadd.f32 %v1407, %v1485
  %v1632 = vadd.f32 %v1408, %v1490
  %v1633 = vadd.f32 %v1409, %v1490
  %v1634 = vadd.f32 %v1410, %v1495
  %v1635 = vadd.f32 %v1411, %v1495
  %v1636 = vadd.f32 %v1412, %v1500
  %v1637 = vadd.f32 %v1413, %v1500
  %v1638 = vadd.f32 %v1414, %v1505
  %v1639 = vadd.f32 %v1415, %v1505
  %v1640 = vadd.f32 %v1416, %v1510
  %v1641 = vadd.f32 %v1417, %v1510
  %v1642 = vadd.f32 %v1418, %v1515
  %v1643 = vadd.f32 %v1419, %v1515
  %v1644 = vadd.f32 %v1420, %v1520
  %v1645 = vadd.f32 %v1421, %v1520
  %v1646 = vadd.f32 %v1422, %v1525
  %v1647 = vadd.f32 %v1423, %v1525
  %v1648 = vadd.f32 %v1424, %v1530
  %v1649 = vadd.f32 %v1425, %v1530
  %v1650 = vadd.f32 %v1426, %v1535
  %v1651 = vadd.f32 %v1427, %v1535
  %v1652 = vadd.f32 %v1428, %v1540
  %v1653 = vadd.f32 %v1429, %v1540
  %v1654 = vadd.f32 %v1430, %v1545
  %v1655 = vadd.f32 %v1431, %v1545
  %v1656 = vadd.f32 %v1432, %v1550
  %v1657 = vadd.f32 %v1433, %v1550
  %v1658 = vadd.f32 %v1434, %v1555
  %v1659 = vadd.f32 %v1435, %v1555
  %v1660 = vadd.f32 %v1436, %v1560
  %v1661 = vadd.f32 %v1437, %v1560
  %v1662 = vadd.f32 %v1438, %v1565
  %v1663 = vadd.f32 %v1439, %v1565
  %v1664 = vadd.f32 %v1440, %v1570
  %v1665 = vadd.f32 %v1441, %v1570
  %v1666 = vadd.f32 %v1442, %v1575
  %v1667 = vadd.f32 %v1443, %v1575
  %v1668 = vadd.f32 %v1444, %v1580
  %v1669 = vadd.f32 %v1445, %v1580
  %v1670 = vadd.f32 %v1446, %v1585
  %v1671 = vadd.f32 %v1447, %v1585
  %v1672 = vadd.f32 %v1448, %v1590
  %v1673 = vadd.f32 %v1449, %v1590
  %v1674 = vadd.f32 %v1450, %v1595
  %v1675 = vadd.f32 %v1451, %v1595
  %v1676 = vadd.f32 %v1452, %v1600
  %v1677 = vadd.f32 %v1453, %v1600
  %v1678 = vadd.f32 %v1454, %v1605
  %v1679 = vadd.f32 %v1455, %v1605
  %v1680 = vadd.f32 %v1456, %v1610
  %v1681 = vadd.f32 %v1457, %v1610
  %v1682 = vadd.f32 %v1458, %v1615
  %v1683 = vadd.f32 %v1459, %v1615
  %v1684 = vadd.f32 %v1460, %v1620
  %v1685 = vadd.f32 %v1461, %v1620
  %v1686 = vmax.f32 %v1622, 0.0
  %v1687 = vmax.f32 %v1623, 0.0
  %v1688 = vmax.f32 %v1624, 0.0
  %v1689 = vmax.f32 %v1625, 0.0
  %v1690 = vmax.f32 %v1626, 0.0
  %v1691 = vmax.f32 %v1627, 0.0
  %v1692 = vmax.f32 %v1628, 0.0
  %v1693 = vmax.f32 %v1629, 0.0
  %v1694 = vmax.f32 %v1630, 0.0
  %v1695 = vmax.f32 %v1631, 0.0
  %v1696 = vmax.f32 %v1632, 0.0
  %v1697 = vmax.f32 %v1633, 0.0
  %v1698 = vmax.f32 %v1634, 0.0
  %v1699 = vmax.f32 %v1635, 0.0
  %v1700 = vmax.f32 %v1636, 0.0
  %v1701 = vmax.f32 %v1637, 0.0
  %v1702 = vmax.f32 %v1638, 0.0
  %v1703 = vmax.f32 %v1639, 0.0
  %v1704 = vmax.f32 %v1640, 0.0
  %v1705 = vmax.f32 %v1641, 0.0
  %v1706 = vmax.f32 %v1642, 0.0
  %v1707 = vmax.f32 %v1643, 0.0
  %v1708 = vmax.f32 %v1644, 0.0
  %v1709 = vmax.f32 %v1645, 0.0
  %v1710 = vmax.f32 %v1646, 0.0
  %v1711 = vmax.f32 %v1647, 0.0
  %v1712 = vmax.f32 %v1648, 0.0
  %v1713 = vmax.f32 %v1649, 0.0
  %v1714 = vmax.f32 %v1650, 0.0
  %v1715 = vmax.f32 %v1651, 0.0
  %v1716 = vmax.f32 %v1652, 0.0
  %v1717 = vmax.f32 %v1653, 0.0
  %v1718 = vmax.f32 %v1654, 0.0
  %v1719 = vmax.f32 %v1655, 0.0
  %v1720 = vmax.f32 %v1656, 0.0
  %v1721 = vmax.f32 %v1657, 0.0
  %v1722 = vmax.f32 %v1658, 0.0
  %v1723 = vmax.f32 %v1659, 0.0
  %v1724 = vmax.f32 %v1660, 0.0
  %v1725 = vmax.f32 %v1661, 0.0
  %v1726 = vmax.f32 %v1662, 0.0
  %v1727 = vmax.f32 %v1663, 0.0
  %v1728 = vmax.f32 %v1664, 0.0
  %v1729 = vmax.f32 %v1665, 0.0
  %v1730 = vmax.f32 %v1666, 0.0
  %v1731 = vmax.f32 %v1667, 0.0
  %v1732 = vmax.f32 %v1668, 0.0
  %v1733 = vmax.f32 %v1669, 0.0
  %v1734 = vmax.f32 %v1670, 0.0
  %v1735 = vmax.f32 %v1671, 0.0
  %v1736 = vmax.f32 %v1672, 0.0
  %v1737 = vmax.f32 %v1673, 0.0
  %v1738 = vmax.f32 %v1674, 0.0
  %v1739 = vmax.f32 %v1675, 0.0
  %v1740 = vmax.f32 %v1676, 0.0
  %v1741 = vmax.f32 %v1677, 0.0
  %v1742 = vmax.f32 %v1678, 0.0
  %v1743 = vmax.f32 %v1679, 0.0
  %v1744 = vmax.f32 %v1680, 0.0
  %v1745 = vmax.f32 %v1681, 0.0
  %v1746 = vmax.f32 %v1682, 0.0
  %v1747 = vmax.f32 %v1683, 0.0
  %v1748 = vmax.f32 %v1684, 0.0
  %v1749 = vmax.f32 %v1685, 0.0
  %1750 = vst [vmem:[%s5] sm:$0xff] %v1686
  %1751 = vst.msk [vmem:[%s5 + $0x8] sm:$0xff] %vm405, %v1687
  %1752 = vst [vmem:[%s5 + $0x10] sm:$0xff] %v1688
  %1753 = vst.msk [vmem:[%s5 + $0x18] sm:$0xff] %vm405, %v1689
  %1754 = vst [vmem:[%s5 + $0x20] sm:$0xff] %v1690
  %1755 = vst.msk [vmem:[%s5 + $0x28] sm:$0xff] %vm405, %v1691
  %1756 = vst [vmem:[%s5 + $0x30] sm:$0xff] %v1692
  %1757 = vst.msk [vmem:[%s5 + $0x38] sm:$0xff] %vm405, %v1693
  %1758 = vst [vmem:[%s5 + $0x40] sm:$0xff] %v1694
  %1759 = vst.msk [vmem:[%s5 + $0x48] sm:$0xff] %vm405, %v1695
  %1760 = vst [vmem:[%s5 + $0x50] sm:$0xff] %v1696
  %1761 = vst.msk [vmem:[%s5 + $0x58] sm:$0xff] %vm405, %v1697
  %1762 = vst [vmem:[%s5 + $0x60] sm:$0xff] %v1698
  %1763 = vst.msk [vmem:[%s5 + $0x68] sm:$0xff] %vm405, %v1699
  %1764 = vst [vmem:[%s5 + $0x70] sm:$0xff] %v1700
  %1765 = vst.msk [vmem:[%s5 + $0x78] sm:$0xff] %vm405, %v1701
  %1766 = vst [vmem:[%s5 + $0x80] sm:$0xff] %v1702
  %1767 = vst.msk [vmem:[%s5 + $0x88] sm:$0xff] %vm405, %v1703
  %1768 = vst [vmem:[%s5 + $0x90] sm:$0xff] %v1704
  %1769 = vst.msk [vmem:[%s5 + $0x98] sm:$0xff] %vm405, %v1705
  %1770 = vst [vmem:[%s5 + $0xa0] sm:$0xff] %v1706
  %1771 = vst.msk [vmem:[%s5 + $0xa8] sm:$0xff] %vm405, %v1707
  %1772 = vst [vmem:[%s5 + $0xb0] sm:$0xff] %v1708
  %1773 = vst.msk [vmem:[%s5 + $0xb8] sm:$0xff] %vm405, %v1709
  %1774 = vst [vmem:[%s5 + $0xc0] sm:$0xff] %v1710
  %1775 = vst.msk [vmem:[%s5 + $0xc8] sm:$0xff] %vm405, %v1711
  %1776 = vst [vmem:[%s5 + $0xd0] sm:$0xff] %v1712
  %1777 = vst.msk [vmem:[%s5 + $0xd8] sm:$0xff] %vm405, %v1713
  %1778 = vst [vmem:[%s5 + $0xe0] sm:$0xff] %v1714
  %1779 = vst.msk [vmem:[%s5 + $0xe8] sm:$0xff] %vm405, %v1715
  %1780 = vst [vmem:[%s5 + $0xf0] sm:$0xff] %v1716
  %1781 = vst.msk [vmem:[%s5 + $0xf8] sm:$0xff] %vm405, %v1717
  %1782 = vst [vmem:[%s5 + $0x100] sm:$0xff] %v1718
  %1783 = vst.msk [vmem:[%s5 + $0x108] sm:$0xff] %vm405, %v1719
  %1784 = vst [vmem:[%s5 + $0x110] sm:$0xff] %v1720
  %1785 = vst.msk [vmem:[%s5 + $0x118] sm:$0xff] %vm405, %v1721
  %1786 = vst [vmem:[%s5 + $0x120] sm:$0xff] %v1722
  %1787 = vst.msk [vmem:[%s5 + $0x128] sm:$0xff] %vm405, %v1723
  %1788 = vst [vmem:[%s5 + $0x130] sm:$0xff] %v1724
  %1789 = vst.msk [vmem:[%s5 + $0x138] sm:$0xff] %vm405, %v1725
  %1790 = vst [vmem:[%s5 + $0x140] sm:$0xff] %v1726
  %1791 = vst.msk [vmem:[%s5 + $0x148] sm:$0xff] %vm405, %v1727
  %1792 = vst [vmem:[%s5 + $0x150] sm:$0xff] %v1728
  %1793 = vst.msk [vmem:[%s5 + $0x158] sm:$0xff] %vm405, %v1729
  %1794 = vst [vmem:[%s5 + $0x160] sm:$0xff] %v1730
  %1795 = vst.msk [vmem:[%s5 + $0x168] sm:$0xff] %vm405, %v1731
  %1796 = vst [vmem:[%s5 + $0x170] sm:$0xff] %v1732
  %1797 = vst.msk [vmem:[%s5 + $0x178] sm:$0xff] %vm405, %v1733
  %1798 = vst [vmem:[%s5 + $0x180] sm:$0xff] %v1734
  %1799 = vst.msk [vmem:[%s5 + $0x188] sm:$0xff] %vm405, %v1735
  %1800 = vst [vmem:[%s5 + $0x190] sm:$0xff] %v1736
  %1801 = vst.msk [vmem:[%s5 + $0x198] sm:$0xff] %vm405, %v1737
  %1802 = vst [vmem:[%s5 + $0x1a0] sm:$0xff] %v1738
  %1803 = vst.msk [vmem:[%s5 + $0x1a8] sm:$0xff] %vm405, %v1739
  %1804 = vst [vmem:[%s5 + $0x1b0] sm:$0xff] %v1740
  %1805 = vst.msk [vmem:[%s5 + $0x1b8] sm:$0xff] %vm405, %v1741
  %1806 = vst [vmem:[%s5 + $0x1c0] sm:$0xff] %v1742
  %1807 = vst.msk [vmem:[%s5 + $0x1c8] sm:$0xff] %vm405, %v1743
  %1808 = vst [vmem:[%s5 + $0x1d0] sm:$0xff] %v1744
  %1809 = vst.msk [vmem:[%s5 + $0x1d8] sm:$0xff] %vm405, %v1745
  %1810 = vst [vmem:[%s5 + $0x1e0] sm:$0xff] %v1746
  %1811 = vst.msk [vmem:[%s5 + $0x1e8] sm:$0xff] %vm405, %v1747
  %1812 = vst [vmem:[%s5 + $0x1f0] sm:$0xff] %v1748
  %1813 = vst.msk [vmem:[%s5 + $0x1f8] sm:$0xff] %vm405, %v1749
  // Predicated region
  $region22: #{tpu_custom_call.1} parent=0 // pred_check
    _
  $region23: #{tpu_custom_call.1} parent=0 // pred_check_branch
    %1815 = sbr.rel (0) target = $region25
  $region24: #{tpu_custom_call.1} parent=0 // pred_region
    _
  $region25: #{tpu_custom_call.1} parent=0 // pred_fallthru
    _
  // Predicated region
  $region26: #{tpu_custom_call.1} parent=0 // pred_check
    _
  $region27: #{tpu_custom_call.1} parent=0 // pred_check_branch
    %1817 = sbr.rel (0) target = $region29
  $region28: #{tpu_custom_call.1} parent=0 // pred_region
    _
  $region29: #{tpu_custom_call.1} parent=0 // pred_fallthru
    _

</llo_original>
